<compile_context>
chip_gen: v7x
topology: tpu7x:2x2x1
jax: 0.10.0
libtpu: 0.0.40
codegen_flags: <defaults>
</compile_context>

<pallas_src>
import functools

import jax
import jax.numpy as jnp
from jax.experimental import pallas as pl
from jax.experimental.pallas import tpu as pltpu


def _char_decoder_kernel(x_ref, wih_ref, whh_ref, b_ref, wout_ref, bout_ref,
                         h0_ref, c0_ref,
                         s_ref, hout_ref, cout_ref,
                         h_all_sc, *, hidden_size, length):
    H = hidden_size
    B = h0_ref.shape[0]

    # Hoist weight / bias loads out of the recurrence (loaded once).
    wih = wih_ref[...]          # (E, 4H)
    whh = whh_ref[...]          # (H, 4H)
    bias = b_ref[...]           # (1, 4H)

    h = h0_ref[...]             # (B, H)
    c = c0_ref[...]             # (B, H)

    # Fully-unrolled LSTM recurrence; every index/slice is static.
    for t in range(length):
        x_t = x_ref[t]          # (B, E)

        # gates: (B, 4H), PyTorch LSTM gate order [i, f, g, o]
        gates = (jnp.dot(x_t, wih, preferred_element_type=jnp.float32)
                 + jnp.dot(h, whh, preferred_element_type=jnp.float32)
                 + bias)

        # One full-width sigmoid + one full-width tanh (EUP), then static slices.
        sig = jax.nn.sigmoid(gates)
        tnh = jnp.tanh(gates)
        i_g = sig[:, 0:H]
        f_g = sig[:, H:2 * H]
        g_g = tnh[:, 2 * H:3 * H]
        o_g = sig[:, 3 * H:4 * H]

        c = f_g * c + i_g * g_g
        h = o_g * jnp.tanh(c)

        # Stash h_t for the batched projection after the loop.
        h_all_sc[t * B:(t + 1) * B, :] = h

    hout_ref[...] = h
    cout_ref[...] = c

    # Batched char_output_projection: one (L*B, H) @ (H, Vpad) MXU matmul and a
    # single lane-dense (Vpad multiple of 128) store.
    h_all = h_all_sc[...]
    s_ref[...] = (jnp.dot(h_all, wout_ref[...], preferred_element_type=jnp.float32)
                  + bout_ref[...])


def char_decoder_forward(params, input_ids, dec_hidden=None):
    """Pallas equivalent of CharDecoder.forward.

    input_ids : (length, batch) int32
    dec_hidden: optional tuple of (1, batch, H) tensors
    returns   : scores (length, batch, V), (h_t, c_t) each (1, batch, H)
    """
    L, B = input_ids.shape
    emb = params["emb"]                       # (V, E)
    V, E = emb.shape
    H = params["hidden_size"]
    Vpad = ((V + 127) // 128) * 128           # lane-dense projection width

    # Embedding gather (padding_idx row is zero in `emb`) -- plain JAX glue.
    x = emb[input_ids].astype(jnp.float32)    # (L, B, E)

    if dec_hidden is not None:
        h0 = dec_hidden[0].reshape(B, H).astype(jnp.float32)
        c0 = dec_hidden[1].reshape(B, H).astype(jnp.float32)
    else:
        h0 = jnp.zeros((B, H), jnp.float32)
        c0 = jnp.zeros((B, H), jnp.float32)

    w_ih_t = params["w_ih"].T.astype(jnp.float32)                     # (E, 4H)
    w_hh_t = params["w_hh"].T.astype(jnp.float32)                     # (H, 4H)
    bias = (params["b_ih"] + params["b_hh"]).reshape(1, 4 * H).astype(jnp.float32)
    # Zero-pad the output projection so the last dim is a multiple of 128.
    w_out_t = jnp.zeros((H, Vpad), jnp.float32).at[:, :V].set(
        params["w_out"].T.astype(jnp.float32))
    b_out = jnp.zeros((1, Vpad), jnp.float32).at[:, :V].set(
        params["b_out"].astype(jnp.float32))

    kernel = functools.partial(_char_decoder_kernel, hidden_size=H, length=L)

    s2d, h_t, c_t = pl.pallas_call(
        kernel,
        out_shape=(
            jax.ShapeDtypeStruct((L * B, Vpad), jnp.float32),
            jax.ShapeDtypeStruct((B, H), jnp.float32),
            jax.ShapeDtypeStruct((B, H), jnp.float32),
        ),
        grid=(1,),                                             # single invocation
        in_specs=[
            pl.BlockSpec((L, B, E), lambda i: (0, 0, 0)),      # x (whole sequence)
            pl.BlockSpec((E, 4 * H), lambda i: (0, 0)),        # W_ih^T
            pl.BlockSpec((H, 4 * H), lambda i: (0, 0)),        # W_hh^T
            pl.BlockSpec((1, 4 * H), lambda i: (0, 0)),        # b_ih + b_hh
            pl.BlockSpec((H, Vpad), lambda i: (0, 0)),         # W_out^T (padded)
            pl.BlockSpec((1, Vpad), lambda i: (0, 0)),         # b_out   (padded)
            pl.BlockSpec((B, H), lambda i: (0, 0)),            # h0
            pl.BlockSpec((B, H), lambda i: (0, 0)),            # c0
        ],
        out_specs=(
            pl.BlockSpec((L * B, Vpad), lambda i: (0, 0)),     # scores (lane-dense slab)
            pl.BlockSpec((B, H), lambda i: (0, 0)),            # h_T
            pl.BlockSpec((B, H), lambda i: (0, 0)),            # c_T
        ),
        scratch_shapes=[
            pltpu.VMEM((L * B, H), jnp.float32),               # h_t history
        ],
        compiler_params=pltpu.CompilerParams(
            dimension_semantics=("arbitrary",)),
    )(x, w_ih_t, w_hh_t, bias, w_out_t, b_out, h0, c0)

    scores = s2d.reshape(L, B, Vpad)[..., :V]
    return scores, (h_t[None], c_t[None])


def init_params(key, hidden_size=32, char_embedding_size=50,
                vocab_len=30, pad_token=0):
    """Deterministic synthetic init matching the PyTorch module's shapes."""
    ks = jax.random.split(key, 7)
    sc = 0.1
    emb = jax.random.normal(ks[0], (vocab_len, char_embedding_size), jnp.float32) * sc
    emb = emb.at[pad_token].set(0.0)  # nn.Embedding(padding_idx=pad_token)
    return dict(
        hidden_size=hidden_size,
        pad_token=pad_token,
        emb=emb,
        w_ih=jax.random.normal(ks[1], (4 * hidden_size, char_embedding_size), jnp.float32) * sc,
        w_hh=jax.random.normal(ks[2], (4 * hidden_size, hidden_size), jnp.float32) * sc,
        b_ih=jax.random.normal(ks[3], (4 * hidden_size,), jnp.float32) * sc,
        b_hh=jax.random.normal(ks[4], (4 * hidden_size,), jnp.float32) * sc,
        w_out=jax.random.normal(ks[5], (vocab_len, hidden_size), jnp.float32) * sc,
        b_out=jax.random.normal(ks[6], (vocab_len,), jnp.float32) * sc,
    )


def _reference_forward(params, input_ids, dec_hidden=None):
    """Pure-JAX reference (lax.scan LSTM) for correctness checking."""
    L, B = input_ids.shape
    H = params["hidden_size"]
    x = params["emb"][input_ids]
    if dec_hidden is not None:
        h0 = dec_hidden[0].reshape(B, H)
        c0 = dec_hidden[1].reshape(B, H)
    else:
        h0 = jnp.zeros((B, H), jnp.float32)
        c0 = jnp.zeros((B, H), jnp.float32)

    w_ih, w_hh = params["w_ih"], params["w_hh"]
    bias = params["b_ih"] + params["b_hh"]

    def step(carry, x_t):
        h, c = carry
        g = x_t @ w_ih.T + h @ w_hh.T + bias
        i = jax.nn.sigmoid(g[:, 0:H])
        f = jax.nn.sigmoid(g[:, H:2 * H])
        gg = jnp.tanh(g[:, 2 * H:3 * H])
        o = jax.nn.sigmoid(g[:, 3 * H:4 * H])
        c_new = f * c + i * gg
        h_new = o * jnp.tanh(c_new)
        return (h_new, c_new), h_new

    (h_t, c_t), o_seq = jax.lax.scan(step, (h0, c0), x)
    s = o_seq @ params["w_out"].T + params["b_out"]
    return s, (h_t[None], c_t[None])


if __name__ == "__main__":
    key = jax.random.PRNGKey(0)
    k_param, k_ids, k_h, k_c = jax.random.split(key, 4)

    HIDDEN = 32
    EMB = 50
    VOCAB = 30
    LENGTH = 8
    BATCH = 4

    params = init_params(k_param, hidden_size=HIDDEN, char_embedding_size=EMB,
                         vocab_len=VOCAB, pad_token=0)

    input_ids = jax.random.randint(k_ids, (LENGTH, BATCH), 0, VOCAB, dtype=jnp.int32)
    dec_hidden = (jax.random.normal(k_h, (1, BATCH, HIDDEN), jnp.float32) * 0.1,
                  jax.random.normal(k_c, (1, BATCH, HIDDEN), jnp.float32) * 0.1)

    scores, (h_t, c_t) = char_decoder_forward(params, input_ids, dec_hidden)
    jax.block_until_ready((scores, h_t, c_t))

    # correctness check vs pure-JAX LSTM reference
    s_ref, (h_ref, c_ref) = _reference_forward(params, input_ids, dec_hidden)
    assert scores.shape == (LENGTH, BATCH, VOCAB)
    assert h_t.shape == (1, BATCH, HIDDEN) and c_t.shape == (1, BATCH, HIDDEN)
    assert jnp.allclose(scores, s_ref, atol=1e-4), "scores mismatch"
    assert jnp.allclose(h_t, h_ref, atol=1e-4), "h_t mismatch"
    assert jnp.allclose(c_t, c_ref, atol=1e-4), "c_t mismatch"

    print("KERNEL_OK")
</pallas_src>

<mosaic_0001>
module attributes {stable_mosaic.version = 11 : i64} {
  func.func @_char_decoder_kernel(%arg0: i32, %arg1: memref<8x4x50xf32, #tpu.memory_space<vmem>>, %arg2: memref<50x128xf32, #tpu.memory_space<vmem>>, %arg3: memref<32x128xf32, #tpu.memory_space<vmem>>, %arg4: memref<1x128xf32, #tpu.memory_space<vmem>>, %arg5: memref<32x128xf32, #tpu.memory_space<vmem>>, %arg6: memref<1x128xf32, #tpu.memory_space<vmem>>, %arg7: memref<4x32xf32, #tpu.memory_space<vmem>>, %arg8: memref<4x32xf32, #tpu.memory_space<vmem>>, %arg9: memref<32x128xf32, #tpu.memory_space<vmem>>, %arg10: memref<4x32xf32, #tpu.memory_space<vmem>>, %arg11: memref<4x32xf32, #tpu.memory_space<vmem>>, %arg12: memref<32x32xf32, #tpu.memory_space<vmem>>) attributes {dimension_semantics = [#tpu.dimension_semantics<arbitrary>], iteration_bounds = array<i64: 1>, scalar_prefetch = 0 : i64, scratch_operands = 1 : i64, tpu.core_type = #tpu.core_type<tc>, window_params = [{pipeline_mode = #tpu.pipeline_mode<synchronous>, transform_indices = @transform_0, window_bounds = array<i64: 8, 4, 50>}, {pipeline_mode = #tpu.pipeline_mode<synchronous>, transform_indices = @transform_1, window_bounds = array<i64: 50, 128>}, {pipeline_mode = #tpu.pipeline_mode<synchronous>, transform_indices = @transform_2, window_bounds = array<i64: 32, 128>}, {pipeline_mode = #tpu.pipeline_mode<synchronous>, transform_indices = @transform_3, window_bounds = array<i64: 1, 128>}, {pipeline_mode = #tpu.pipeline_mode<synchronous>, transform_indices = @transform_4, window_bounds = array<i64: 32, 128>}, {pipeline_mode = #tpu.pipeline_mode<synchronous>, transform_indices = @transform_5, window_bounds = array<i64: 1, 128>}, {pipeline_mode = #tpu.pipeline_mode<synchronous>, transform_indices = @transform_6, window_bounds = array<i64: 4, 32>}, {pipeline_mode = #tpu.pipeline_mode<synchronous>, transform_indices = @transform_7, window_bounds = array<i64: 4, 32>}, {pipeline_mode = #tpu.pipeline_mode<synchronous>, transform_indices = @transform_8, window_bounds = array<i64: 32, 128>}, {pipeline_mode = #tpu.pipeline_mode<synchronous>, transform_indices = @transform_9, window_bounds = array<i64: 4, 32>}, {pipeline_mode = #tpu.pipeline_mode<synchronous>, transform_indices = @transform_10, window_bounds = array<i64: 4, 32>}]} {
    %c0 = arith.constant 0 : index
    %c0_0 = arith.constant 0 : index
    %0 = vector.load %arg2[%c0, %c0_0] : memref<50x128xf32, #tpu.memory_space<vmem>>, vector<50x128xf32>
    %c0_1 = arith.constant 0 : index
    %c0_2 = arith.constant 0 : index
    %1 = vector.load %arg3[%c0_1, %c0_2] : memref<32x128xf32, #tpu.memory_space<vmem>>, vector<32x128xf32>
    %c0_3 = arith.constant 0 : index
    %c0_4 = arith.constant 0 : index
    %2 = vector.load %arg4[%c0_3, %c0_4] : memref<1x128xf32, #tpu.memory_space<vmem>>, vector<1x128xf32>
    %c0_5 = arith.constant 0 : index
    %c0_6 = arith.constant 0 : index
    %3 = vector.load %arg7[%c0_5, %c0_6] : memref<4x32xf32, #tpu.memory_space<vmem>>, vector<4x32xf32>
    %c0_7 = arith.constant 0 : index
    %c0_8 = arith.constant 0 : index
    %4 = vector.load %arg8[%c0_7, %c0_8] : memref<4x32xf32, #tpu.memory_space<vmem>>, vector<4x32xf32>
    %c0_9 = arith.constant 0 : index
    %c0_10 = arith.constant 0 : index
    %c0_11 = arith.constant 0 : index
    %5 = vector.load %arg1[%c0_9, %c0_10, %c0_11] : memref<8x4x50xf32, #tpu.memory_space<vmem>>, vector<1x4x50xf32>
    %6 = vector.shape_cast %5 : vector<1x4x50xf32> to vector<4x50xf32>
    %cst = arith.constant dense<0.000000e+00> : vector<4x128xf32>
    %7 = tpu.matmul %6, %0, %cst {dimension_numbers = #tpu.dot_dimension_numbers<[1], [0], [0], [1], [0, 0, 1, 1], [], []>} : vector<4x50xf32>, vector<50x128xf32>, vector<4x128xf32> -> vector<4x128xf32>
    %cst_12 = arith.constant dense<0.000000e+00> : vector<4x128xf32>
    %8 = tpu.matmul %3, %1, %cst_12 {dimension_numbers = #tpu.dot_dimension_numbers<[1], [0], [0], [1], [0, 0, 1, 1], [], []>} : vector<4x32xf32>, vector<32x128xf32>, vector<4x128xf32> -> vector<4x128xf32>
    %9 = arith.addf %7, %8 : vector<4x128xf32>
    %10 = vector.broadcast %2 : vector<1x128xf32> to vector<4x128xf32>
    %11 = arith.addf %9, %10 : vector<4x128xf32>
    %12 = arith.negf %11 : vector<4x128xf32>
    %13 = math.exp %12 : vector<4x128xf32>
    %cst_13 = arith.constant 1.000000e+00 : f32
    %14 = vector.broadcast %cst_13 : f32 to vector<4x128xf32>
    %15 = arith.addf %14, %13 : vector<4x128xf32>
    %16 = arith.divf %14, %15 : vector<4x128xf32>
    %17 = math.tanh %11 : vector<4x128xf32>
    %18 = vector.extract_strided_slice %16 {offsets = [0, 0], sizes = [4, 32], strides = [1, 1]} : vector<4x128xf32> to vector<4x32xf32>
    %19 = vector.extract_strided_slice %16 {offsets = [0, 32], sizes = [4, 32], strides = [1, 1]} : vector<4x128xf32> to vector<4x32xf32>
    %20 = vector.extract_strided_slice %17 {offsets = [0, 64], sizes = [4, 32], strides = [1, 1]} : vector<4x128xf32> to vector<4x32xf32>
    %21 = vector.extract_strided_slice %16 {offsets = [0, 96], sizes = [4, 32], strides = [1, 1]} : vector<4x128xf32> to vector<4x32xf32>
    %22 = arith.mulf %19, %4 : vector<4x32xf32>
    %23 = arith.mulf %18, %20 : vector<4x32xf32>
    %24 = arith.addf %22, %23 : vector<4x32xf32>
    %25 = math.tanh %24 : vector<4x32xf32>
    %26 = arith.mulf %21, %25 : vector<4x32xf32>
    %c0_14 = arith.constant 0 : index
    %c0_15 = arith.constant 0 : index
    %27 = vector.load %arg12[%c0_14, %c0_15] : memref<32x32xf32, #tpu.memory_space<vmem>>, vector<4x32xf32>
    tpu.vector_store %arg12[%c0_14, %c0_15], %26 {strides = array<i32>} : memref<32x32xf32, #tpu.memory_space<vmem>>, vector<4x32xf32>,
    %c1 = arith.constant 1 : index
    %c0_16 = arith.constant 0 : index
    %c0_17 = arith.constant 0 : index
    %28 = vector.load %arg1[%c1, %c0_16, %c0_17] : memref<8x4x50xf32, #tpu.memory_space<vmem>>, vector<1x4x50xf32>
    %29 = vector.shape_cast %28 : vector<1x4x50xf32> to vector<4x50xf32>
    %cst_18 = arith.constant dense<0.000000e+00> : vector<4x128xf32>
    %30 = tpu.matmul %29, %0, %cst_18 {dimension_numbers = #tpu.dot_dimension_numbers<[1], [0], [0], [1], [0, 0, 1, 1], [], []>} : vector<4x50xf32>, vector<50x128xf32>, vector<4x128xf32> -> vector<4x128xf32>
    %cst_19 = arith.constant dense<0.000000e+00> : vector<4x128xf32>
    %31 = tpu.matmul %26, %1, %cst_19 {dimension_numbers = #tpu.dot_dimension_numbers<[1], [0], [0], [1], [0, 0, 1, 1], [], []>} : vector<4x32xf32>, vector<32x128xf32>, vector<4x128xf32> -> vector<4x128xf32>
    %32 = arith.addf %30, %31 : vector<4x128xf32>
    %33 = vector.broadcast %2 : vector<1x128xf32> to vector<4x128xf32>
    %34 = arith.addf %32, %33 : vector<4x128xf32>
    %35 = arith.negf %34 : vector<4x128xf32>
    %36 = math.exp %35 : vector<4x128xf32>
    %cst_20 = arith.constant 1.000000e+00 : f32
    %37 = vector.broadcast %cst_20 : f32 to vector<4x128xf32>
    %38 = arith.addf %37, %36 : vector<4x128xf32>
    %39 = arith.divf %37, %38 : vector<4x128xf32>
    %40 = math.tanh %34 : vector<4x128xf32>
    %41 = vector.extract_strided_slice %39 {offsets = [0, 0], sizes = [4, 32], strides = [1, 1]} : vector<4x128xf32> to vector<4x32xf32>
    %42 = vector.extract_strided_slice %39 {offsets = [0, 32], sizes = [4, 32], strides = [1, 1]} : vector<4x128xf32> to vector<4x32xf32>
    %43 = vector.extract_strided_slice %40 {offsets = [0, 64], sizes = [4, 32], strides = [1, 1]} : vector<4x128xf32> to vector<4x32xf32>
    %44 = vector.extract_strided_slice %39 {offsets = [0, 96], sizes = [4, 32], strides = [1, 1]} : vector<4x128xf32> to vector<4x32xf32>
    %45 = arith.mulf %42, %24 : vector<4x32xf32>
    %46 = arith.mulf %41, %43 : vector<4x32xf32>
    %47 = arith.addf %45, %46 : vector<4x32xf32>
    %48 = math.tanh %47 : vector<4x32xf32>
    %49 = arith.mulf %44, %48 : vector<4x32xf32>
    %c4 = arith.constant 4 : index
    %c0_21 = arith.constant 0 : index
    %50 = vector.load %arg12[%c4, %c0_21] : memref<32x32xf32, #tpu.memory_space<vmem>>, vector<4x32xf32>
    tpu.vector_store %arg12[%c4, %c0_21], %49 {strides = array<i32>} : memref<32x32xf32, #tpu.memory_space<vmem>>, vector<4x32xf32>,
    %c2 = arith.constant 2 : index
    %c0_22 = arith.constant 0 : index
    %c0_23 = arith.constant 0 : index
    %51 = vector.load %arg1[%c2, %c0_22, %c0_23] : memref<8x4x50xf32, #tpu.memory_space<vmem>>, vector<1x4x50xf32>
    %52 = vector.shape_cast %51 : vector<1x4x50xf32> to vector<4x50xf32>
    %cst_24 = arith.constant dense<0.000000e+00> : vector<4x128xf32>
    %53 = tpu.matmul %52, %0, %cst_24 {dimension_numbers = #tpu.dot_dimension_numbers<[1], [0], [0], [1], [0, 0, 1, 1], [], []>} : vector<4x50xf32>, vector<50x128xf32>, vector<4x128xf32> -> vector<4x128xf32>
    %cst_25 = arith.constant dense<0.000000e+00> : vector<4x128xf32>
    %54 = tpu.matmul %49, %1, %cst_25 {dimension_numbers = #tpu.dot_dimension_numbers<[1], [0], [0], [1], [0, 0, 1, 1], [], []>} : vector<4x32xf32>, vector<32x128xf32>, vector<4x128xf32> -> vector<4x128xf32>
    %55 = arith.addf %53, %54 : vector<4x128xf32>
    %56 = vector.broadcast %2 : vector<1x128xf32> to vector<4x128xf32>
    %57 = arith.addf %55, %56 : vector<4x128xf32>
    %58 = arith.negf %57 : vector<4x128xf32>
    %59 = math.exp %58 : vector<4x128xf32>
    %cst_26 = arith.constant 1.000000e+00 : f32
    %60 = vector.broadcast %cst_26 : f32 to vector<4x128xf32>
    %61 = arith.addf %60, %59 : vector<4x128xf32>
    %62 = arith.divf %60, %61 : vector<4x128xf32>
    %63 = math.tanh %57 : vector<4x128xf32>
    %64 = vector.extract_strided_slice %62 {offsets = [0, 0], sizes = [4, 32], strides = [1, 1]} : vector<4x128xf32> to vector<4x32xf32>
    %65 = vector.extract_strided_slice %62 {offsets = [0, 32], sizes = [4, 32], strides = [1, 1]} : vector<4x128xf32> to vector<4x32xf32>
    %66 = vector.extract_strided_slice %63 {offsets = [0, 64], sizes = [4, 32], strides = [1, 1]} : vector<4x128xf32> to vector<4x32xf32>
    %67 = vector.extract_strided_slice %62 {offsets = [0, 96], sizes = [4, 32], strides = [1, 1]} : vector<4x128xf32> to vector<4x32xf32>
    %68 = arith.mulf %65, %47 : vector<4x32xf32>
    %69 = arith.mulf %64, %66 : vector<4x32xf32>
    %70 = arith.addf %68, %69 : vector<4x32xf32>
    %71 = math.tanh %70 : vector<4x32xf32>
    %72 = arith.mulf %67, %71 : vector<4x32xf32>
    %c8 = arith.constant 8 : index
    %c0_27 = arith.constant 0 : index
    %73 = vector.load %arg12[%c8, %c0_27] : memref<32x32xf32, #tpu.memory_space<vmem>>, vector<4x32xf32>
    tpu.vector_store %arg12[%c8, %c0_27], %72 {strides = array<i32>} : memref<32x32xf32, #tpu.memory_space<vmem>>, vector<4x32xf32>,
    %c3 = arith.constant 3 : index
    %c0_28 = arith.constant 0 : index
    %c0_29 = arith.constant 0 : index
    %74 = vector.load %arg1[%c3, %c0_28, %c0_29] : memref<8x4x50xf32, #tpu.memory_space<vmem>>, vector<1x4x50xf32>
    %75 = vector.shape_cast %74 : vector<1x4x50xf32> to vector<4x50xf32>
    %cst_30 = arith.constant dense<0.000000e+00> : vector<4x128xf32>
    %76 = tpu.matmul %75, %0, %cst_30 {dimension_numbers = #tpu.dot_dimension_numbers<[1], [0], [0], [1], [0, 0, 1, 1], [], []>} : vector<4x50xf32>, vector<50x128xf32>, vector<4x128xf32> -> vector<4x128xf32>
    %cst_31 = arith.constant dense<0.000000e+00> : vector<4x128xf32>
    %77 = tpu.matmul %72, %1, %cst_31 {dimension_numbers = #tpu.dot_dimension_numbers<[1], [0], [0], [1], [0, 0, 1, 1], [], []>} : vector<4x32xf32>, vector<32x128xf32>, vector<4x128xf32> -> vector<4x128xf32>
    %78 = arith.addf %76, %77 : vector<4x128xf32>
    %79 = vector.broadcast %2 : vector<1x128xf32> to vector<4x128xf32>
    %80 = arith.addf %78, %79 : vector<4x128xf32>
    %81 = arith.negf %80 : vector<4x128xf32>
    %82 = math.exp %81 : vector<4x128xf32>
    %cst_32 = arith.constant 1.000000e+00 : f32
    %83 = vector.broadcast %cst_32 : f32 to vector<4x128xf32>
    %84 = arith.addf %83, %82 : vector<4x128xf32>
    %85 = arith.divf %83, %84 : vector<4x128xf32>
    %86 = math.tanh %80 : vector<4x128xf32>
    %87 = vector.extract_strided_slice %85 {offsets = [0, 0], sizes = [4, 32], strides = [1, 1]} : vector<4x128xf32> to vector<4x32xf32>
    %88 = vector.extract_strided_slice %85 {offsets = [0, 32], sizes = [4, 32], strides = [1, 1]} : vector<4x128xf32> to vector<4x32xf32>
    %89 = vector.extract_strided_slice %86 {offsets = [0, 64], sizes = [4, 32], strides = [1, 1]} : vector<4x128xf32> to vector<4x32xf32>
    %90 = vector.extract_strided_slice %85 {offsets = [0, 96], sizes = [4, 32], strides = [1, 1]} : vector<4x128xf32> to vector<4x32xf32>
    %91 = arith.mulf %88, %70 : vector<4x32xf32>
    %92 = arith.mulf %87, %89 : vector<4x32xf32>
    %93 = arith.addf %91, %92 : vector<4x32xf32>
    %94 = math.tanh %93 : vector<4x32xf32>
    %95 = arith.mulf %90, %94 : vector<4x32xf32>
    %c12 = arith.constant 12 : index
    %c0_33 = arith.constant 0 : index
    %96 = vector.load %arg12[%c12, %c0_33] : memref<32x32xf32, #tpu.memory_space<vmem>>, vector<4x32xf32>
    tpu.vector_store %arg12[%c12, %c0_33], %95 {strides = array<i32>} : memref<32x32xf32, #tpu.memory_space<vmem>>, vector<4x32xf32>,
    %c4_34 = arith.constant 4 : index
    %c0_35 = arith.constant 0 : index
    %c0_36 = arith.constant 0 : index
    %97 = vector.load %arg1[%c4_34, %c0_35, %c0_36] : memref<8x4x50xf32, #tpu.memory_space<vmem>>, vector<1x4x50xf32>
    %98 = vector.shape_cast %97 : vector<1x4x50xf32> to vector<4x50xf32>
    %cst_37 = arith.constant dense<0.000000e+00> : vector<4x128xf32>
    %99 = tpu.matmul %98, %0, %cst_37 {dimension_numbers = #tpu.dot_dimension_numbers<[1], [0], [0], [1], [0, 0, 1, 1], [], []>} : vector<4x50xf32>, vector<50x128xf32>, vector<4x128xf32> -> vector<4x128xf32>
    %cst_38 = arith.constant dense<0.000000e+00> : vector<4x128xf32>
    %100 = tpu.matmul %95, %1, %cst_38 {dimension_numbers = #tpu.dot_dimension_numbers<[1], [0], [0], [1], [0, 0, 1, 1], [], []>} : vector<4x32xf32>, vector<32x128xf32>, vector<4x128xf32> -> vector<4x128xf32>
    %101 = arith.addf %99, %100 : vector<4x128xf32>
    %102 = vector.broadcast %2 : vector<1x128xf32> to vector<4x128xf32>
    %103 = arith.addf %101, %102 : vector<4x128xf32>
    %104 = arith.negf %103 : vector<4x128xf32>
    %105 = math.exp %104 : vector<4x128xf32>
    %cst_39 = arith.constant 1.000000e+00 : f32
    %106 = vector.broadcast %cst_39 : f32 to vector<4x128xf32>
    %107 = arith.addf %106, %105 : vector<4x128xf32>
    %108 = arith.divf %106, %107 : vector<4x128xf32>
    %109 = math.tanh %103 : vector<4x128xf32>
    %110 = vector.extract_strided_slice %108 {offsets = [0, 0], sizes = [4, 32], strides = [1, 1]} : vector<4x128xf32> to vector<4x32xf32>
    %111 = vector.extract_strided_slice %108 {offsets = [0, 32], sizes = [4, 32], strides = [1, 1]} : vector<4x128xf32> to vector<4x32xf32>
    %112 = vector.extract_strided_slice %109 {offsets = [0, 64], sizes = [4, 32], strides = [1, 1]} : vector<4x128xf32> to vector<4x32xf32>
    %113 = vector.extract_strided_slice %108 {offsets = [0, 96], sizes = [4, 32], strides = [1, 1]} : vector<4x128xf32> to vector<4x32xf32>
    %114 = arith.mulf %111, %93 : vector<4x32xf32>
    %115 = arith.mulf %110, %112 : vector<4x32xf32>
    %116 = arith.addf %114, %115 : vector<4x32xf32>
    %117 = math.tanh %116 : vector<4x32xf32>
    %118 = arith.mulf %113, %117 : vector<4x32xf32>
    %c16 = arith.constant 16 : index
    %c0_40 = arith.constant 0 : index
    %119 = vector.load %arg12[%c16, %c0_40] : memref<32x32xf32, #tpu.memory_space<vmem>>, vector<4x32xf32>
    tpu.vector_store %arg12[%c16, %c0_40], %118 {strides = array<i32>} : memref<32x32xf32, #tpu.memory_space<vmem>>, vector<4x32xf32>,
    %c5 = arith.constant 5 : index
    %c0_41 = arith.constant 0 : index
    %c0_42 = arith.constant 0 : index
    %120 = vector.load %arg1[%c5, %c0_41, %c0_42] : memref<8x4x50xf32, #tpu.memory_space<vmem>>, vector<1x4x50xf32>
    %121 = vector.shape_cast %120 : vector<1x4x50xf32> to vector<4x50xf32>
    %cst_43 = arith.constant dense<0.000000e+00> : vector<4x128xf32>
    %122 = tpu.matmul %121, %0, %cst_43 {dimension_numbers = #tpu.dot_dimension_numbers<[1], [0], [0], [1], [0, 0, 1, 1], [], []>} : vector<4x50xf32>, vector<50x128xf32>, vector<4x128xf32> -> vector<4x128xf32>
    %cst_44 = arith.constant dense<0.000000e+00> : vector<4x128xf32>
    %123 = tpu.matmul %118, %1, %cst_44 {dimension_numbers = #tpu.dot_dimension_numbers<[1], [0], [0], [1], [0, 0, 1, 1], [], []>} : vector<4x32xf32>, vector<32x128xf32>, vector<4x128xf32> -> vector<4x128xf32>
    %124 = arith.addf %122, %123 : vector<4x128xf32>
    %125 = vector.broadcast %2 : vector<1x128xf32> to vector<4x128xf32>
    %126 = arith.addf %124, %125 : vector<4x128xf32>
    %127 = arith.negf %126 : vector<4x128xf32>
    %128 = math.exp %127 : vector<4x128xf32>
    %cst_45 = arith.constant 1.000000e+00 : f32
    %129 = vector.broadcast %cst_45 : f32 to vector<4x128xf32>
    %130 = arith.addf %129, %128 : vector<4x128xf32>
    %131 = arith.divf %129, %130 : vector<4x128xf32>
    %132 = math.tanh %126 : vector<4x128xf32>
    %133 = vector.extract_strided_slice %131 {offsets = [0, 0], sizes = [4, 32], strides = [1, 1]} : vector<4x128xf32> to vector<4x32xf32>
    %134 = vector.extract_strided_slice %131 {offsets = [0, 32], sizes = [4, 32], strides = [1, 1]} : vector<4x128xf32> to vector<4x32xf32>
    %135 = vector.extract_strided_slice %132 {offsets = [0, 64], sizes = [4, 32], strides = [1, 1]} : vector<4x128xf32> to vector<4x32xf32>
    %136 = vector.extract_strided_slice %131 {offsets = [0, 96], sizes = [4, 32], strides = [1, 1]} : vector<4x128xf32> to vector<4x32xf32>
    %137 = arith.mulf %134, %116 : vector<4x32xf32>
    %138 = arith.mulf %133, %135 : vector<4x32xf32>
    %139 = arith.addf %137, %138 : vector<4x32xf32>
    %140 = math.tanh %139 : vector<4x32xf32>
    %141 = arith.mulf %136, %140 : vector<4x32xf32>
    %c20 = arith.constant 20 : index
    %c0_46 = arith.constant 0 : index
    %142 = vector.load %arg12[%c20, %c0_46] : memref<32x32xf32, #tpu.memory_space<vmem>>, vector<4x32xf32>
    tpu.vector_store %arg12[%c20, %c0_46], %141 {strides = array<i32>} : memref<32x32xf32, #tpu.memory_space<vmem>>, vector<4x32xf32>,
    %c6 = arith.constant 6 : index
    %c0_47 = arith.constant 0 : index
    %c0_48 = arith.constant 0 : index
    %143 = vector.load %arg1[%c6, %c0_47, %c0_48] : memref<8x4x50xf32, #tpu.memory_space<vmem>>, vector<1x4x50xf32>
    %144 = vector.shape_cast %143 : vector<1x4x50xf32> to vector<4x50xf32>
    %cst_49 = arith.constant dense<0.000000e+00> : vector<4x128xf32>
    %145 = tpu.matmul %144, %0, %cst_49 {dimension_numbers = #tpu.dot_dimension_numbers<[1], [0], [0], [1], [0, 0, 1, 1], [], []>} : vector<4x50xf32>, vector<50x128xf32>, vector<4x128xf32> -> vector<4x128xf32>
    %cst_50 = arith.constant dense<0.000000e+00> : vector<4x128xf32>
    %146 = tpu.matmul %141, %1, %cst_50 {dimension_numbers = #tpu.dot_dimension_numbers<[1], [0], [0], [1], [0, 0, 1, 1], [], []>} : vector<4x32xf32>, vector<32x128xf32>, vector<4x128xf32> -> vector<4x128xf32>
    %147 = arith.addf %145, %146 : vector<4x128xf32>
    %148 = vector.broadcast %2 : vector<1x128xf32> to vector<4x128xf32>
    %149 = arith.addf %147, %148 : vector<4x128xf32>
    %150 = arith.negf %149 : vector<4x128xf32>
    %151 = math.exp %150 : vector<4x128xf32>
    %cst_51 = arith.constant 1.000000e+00 : f32
    %152 = vector.broadcast %cst_51 : f32 to vector<4x128xf32>
    %153 = arith.addf %152, %151 : vector<4x128xf32>
    %154 = arith.divf %152, %153 : vector<4x128xf32>
    %155 = math.tanh %149 : vector<4x128xf32>
    %156 = vector.extract_strided_slice %154 {offsets = [0, 0], sizes = [4, 32], strides = [1, 1]} : vector<4x128xf32> to vector<4x32xf32>
    %157 = vector.extract_strided_slice %154 {offsets = [0, 32], sizes = [4, 32], strides = [1, 1]} : vector<4x128xf32> to vector<4x32xf32>
    %158 = vector.extract_strided_slice %155 {offsets = [0, 64], sizes = [4, 32], strides = [1, 1]} : vector<4x128xf32> to vector<4x32xf32>
    %159 = vector.extract_strided_slice %154 {offsets = [0, 96], sizes = [4, 32], strides = [1, 1]} : vector<4x128xf32> to vector<4x32xf32>
    %160 = arith.mulf %157, %139 : vector<4x32xf32>
    %161 = arith.mulf %156, %158 : vector<4x32xf32>
    %162 = arith.addf %160, %161 : vector<4x32xf32>
    %163 = math.tanh %162 : vector<4x32xf32>
    %164 = arith.mulf %159, %163 : vector<4x32xf32>
    %c24 = arith.constant 24 : index
    %c0_52 = arith.constant 0 : index
    %165 = vector.load %arg12[%c24, %c0_52] : memref<32x32xf32, #tpu.memory_space<vmem>>, vector<4x32xf32>
    tpu.vector_store %arg12[%c24, %c0_52], %164 {strides = array<i32>} : memref<32x32xf32, #tpu.memory_space<vmem>>, vector<4x32xf32>,
    %c7 = arith.constant 7 : index
    %c0_53 = arith.constant 0 : index
    %c0_54 = arith.constant 0 : index
    %166 = vector.load %arg1[%c7, %c0_53, %c0_54] : memref<8x4x50xf32, #tpu.memory_space<vmem>>, vector<1x4x50xf32>
    %167 = vector.shape_cast %166 : vector<1x4x50xf32> to vector<4x50xf32>
    %cst_55 = arith.constant dense<0.000000e+00> : vector<4x128xf32>
    %168 = tpu.matmul %167, %0, %cst_55 {dimension_numbers = #tpu.dot_dimension_numbers<[1], [0], [0], [1], [0, 0, 1, 1], [], []>} : vector<4x50xf32>, vector<50x128xf32>, vector<4x128xf32> -> vector<4x128xf32>
    %cst_56 = arith.constant dense<0.000000e+00> : vector<4x128xf32>
    %169 = tpu.matmul %164, %1, %cst_56 {dimension_numbers = #tpu.dot_dimension_numbers<[1], [0], [0], [1], [0, 0, 1, 1], [], []>} : vector<4x32xf32>, vector<32x128xf32>, vector<4x128xf32> -> vector<4x128xf32>
    %170 = arith.addf %168, %169 : vector<4x128xf32>
    %171 = vector.broadcast %2 : vector<1x128xf32> to vector<4x128xf32>
    %172 = arith.addf %170, %171 : vector<4x128xf32>
    %173 = arith.negf %172 : vector<4x128xf32>
    %174 = math.exp %173 : vector<4x128xf32>
    %cst_57 = arith.constant 1.000000e+00 : f32
    %175 = vector.broadcast %cst_57 : f32 to vector<4x128xf32>
    %176 = arith.addf %175, %174 : vector<4x128xf32>
    %177 = arith.divf %175, %176 : vector<4x128xf32>
    %178 = math.tanh %172 : vector<4x128xf32>
    %179 = vector.extract_strided_slice %177 {offsets = [0, 0], sizes = [4, 32], strides = [1, 1]} : vector<4x128xf32> to vector<4x32xf32>
    %180 = vector.extract_strided_slice %177 {offsets = [0, 32], sizes = [4, 32], strides = [1, 1]} : vector<4x128xf32> to vector<4x32xf32>
    %181 = vector.extract_strided_slice %178 {offsets = [0, 64], sizes = [4, 32], strides = [1, 1]} : vector<4x128xf32> to vector<4x32xf32>
    %182 = vector.extract_strided_slice %177 {offsets = [0, 96], sizes = [4, 32], strides = [1, 1]} : vector<4x128xf32> to vector<4x32xf32>
    %183 = arith.mulf %180, %162 : vector<4x32xf32>
    %184 = arith.mulf %179, %181 : vector<4x32xf32>
    %185 = arith.addf %183, %184 : vector<4x32xf32>
    %186 = math.tanh %185 : vector<4x32xf32>
    %187 = arith.mulf %182, %186 : vector<4x32xf32>
    %c28 = arith.constant 28 : index
    %c0_58 = arith.constant 0 : index
    %188 = vector.load %arg12[%c28, %c0_58] : memref<32x32xf32, #tpu.memory_space<vmem>>, vector<4x32xf32>
    tpu.vector_store %arg12[%c28, %c0_58], %187 {strides = array<i32>} : memref<32x32xf32, #tpu.memory_space<vmem>>, vector<4x32xf32>,
    %c0_59 = arith.constant 0 : index
    %c0_60 = arith.constant 0 : index
    %189 = vector.load %arg10[%c0_59, %c0_60] : memref<4x32xf32, #tpu.memory_space<vmem>>, vector<4x32xf32>
    tpu.vector_store %arg10[%c0_59, %c0_60], %187 {strides = array<i32>} : memref<4x32xf32, #tpu.memory_space<vmem>>, vector<4x32xf32>,
    %c0_61 = arith.constant 0 : index
    %c0_62 = arith.constant 0 : index
    %190 = vector.load %arg11[%c0_61, %c0_62] : memref<4x32xf32, #tpu.memory_space<vmem>>, vector<4x32xf32>
    tpu.vector_store %arg11[%c0_61, %c0_62], %185 {strides = array<i32>} : memref<4x32xf32, #tpu.memory_space<vmem>>, vector<4x32xf32>,
    %c0_63 = arith.constant 0 : index
    %c0_64 = arith.constant 0 : index
    %191 = vector.load %arg12[%c0_63, %c0_64] : memref<32x32xf32, #tpu.memory_space<vmem>>, vector<32x32xf32>
    %c0_65 = arith.constant 0 : index
    %c0_66 = arith.constant 0 : index
    %192 = vector.load %arg5[%c0_65, %c0_66] : memref<32x128xf32, #tpu.memory_space<vmem>>, vector<32x128xf32>
    %cst_67 = arith.constant dense<0.000000e+00> : vector<32x128xf32>
    %193 = tpu.matmul %191, %192, %cst_67 {dimension_numbers = #tpu.dot_dimension_numbers<[1], [0], [0], [1], [0, 0, 1, 1], [], []>} : vector<32x32xf32>, vector<32x128xf32>, vector<32x128xf32> -> vector<32x128xf32>
    %c0_68 = arith.constant 0 : index
    %c0_69 = arith.constant 0 : index
    %194 = vector.load %arg6[%c0_68, %c0_69] : memref<1x128xf32, #tpu.memory_space<vmem>>, vector<1x128xf32>
    %195 = vector.broadcast %194 : vector<1x128xf32> to vector<32x128xf32>
    %196 = arith.addf %193, %195 : vector<32x128xf32>
    %c0_70 = arith.constant 0 : index
    %c0_71 = arith.constant 0 : index
    %197 = vector.load %arg9[%c0_70, %c0_71] : memref<32x128xf32, #tpu.memory_space<vmem>>, vector<32x128xf32>
    tpu.vector_store %arg9[%c0_70, %c0_71], %196 {strides = array<i32>} : memref<32x128xf32, #tpu.memory_space<vmem>>, vector<32x128xf32>,
    return
  }
  func.func @transform_0(%arg0: i32) -> (i32, i32, i32) {
    %c0_i32 = arith.constant 0 : i32
    %c0_i32_0 = arith.constant 0 : i32
    %c0_i32_1 = arith.constant 0 : i32
    %c0_i32_2 = arith.constant 0 : i32
    return %c0_i32, %c0_i32_0, %c0_i32_1 : i32, i32, i32
  }
  func.func @transform_1(%arg0: i32) -> (i32, i32) {
    %c0_i32 = arith.constant 0 : i32
    %c0_i32_0 = arith.constant 0 : i32
    %c0_i32_1 = arith.constant 0 : i32
    return %c0_i32, %c0_i32_0 : i32, i32
  }
  func.func @transform_2(%arg0: i32) -> (i32, i32) {
    %c0_i32 = arith.constant 0 : i32
    %c0_i32_0 = arith.constant 0 : i32
    %c0_i32_1 = arith.constant 0 : i32
    return %c0_i32, %c0_i32_0 : i32, i32
  }
  func.func @transform_3(%arg0: i32) -> (i32, i32) {
    %c0_i32 = arith.constant 0 : i32
    %c0_i32_0 = arith.constant 0 : i32
    %c0_i32_1 = arith.constant 0 : i32
    return %c0_i32, %c0_i32_0 : i32, i32
  }
  func.func @transform_4(%arg0: i32) -> (i32, i32) {
    %c0_i32 = arith.constant 0 : i32
    %c0_i32_0 = arith.constant 0 : i32
    %c0_i32_1 = arith.constant 0 : i32
    return %c0_i32, %c0_i32_0 : i32, i32
  }
  func.func @transform_5(%arg0: i32) -> (i32, i32) {
    %c0_i32 = arith.constant 0 : i32
    %c0_i32_0 = arith.constant 0 : i32
    %c0_i32_1 = arith.constant 0 : i32
    return %c0_i32, %c0_i32_0 : i32, i32
  }
  func.func @transform_6(%arg0: i32) -> (i32, i32) {
    %c0_i32 = arith.constant 0 : i32
    %c0_i32_0 = arith.constant 0 : i32
    %c0_i32_1 = arith.constant 0 : i32
    return %c0_i32, %c0_i32_0 : i32, i32
  }
  func.func @transform_7(%arg0: i32) -> (i32, i32) {
    %c0_i32 = arith.constant 0 : i32
    %c0_i32_0 = arith.constant 0 : i32
    %c0_i32_1 = arith.constant 0 : i32
    return %c0_i32, %c0_i32_0 : i32, i32
  }
  func.func @transform_8(%arg0: i32) -> (i32, i32) {
    %c0_i32 = arith.constant 0 : i32
    %c0_i32_0 = arith.constant 0 : i32
    %c0_i32_1 = arith.constant 0 : i32
    return %c0_i32, %c0_i32_0 : i32, i32
  }
  func.func @transform_9(%arg0: i32) -> (i32, i32) {
    %c0_i32 = arith.constant 0 : i32
    %c0_i32_0 = arith.constant 0 : i32
    %c0_i32_1 = arith.constant 0 : i32
    return %c0_i32, %c0_i32_0 : i32, i32
  }
  func.func @transform_10(%arg0: i32) -> (i32, i32) {
    %c0_i32 = arith.constant 0 : i32
    %c0_i32_0 = arith.constant 0 : i32
    %c0_i32_1 = arith.constant 0 : i32
    return %c0_i32, %c0_i32_0 : i32, i32
  }
}

</mosaic_0001>

<llo_original>
// kernel: tpu_custom_call.1
$region0: #{tpu_custom_call.1}
  #allocation0 [shape = 'u32[]', space=smem, size = 0x4, offset = 0x4, fixed_abs, tag = 'smem constant byte address 0x4 - core index']
  #allocation1 [shape = 'u32[144,128]{1,0:T(1,128)}', space=vmem, size = 0x12000, scoped, tag = 'internal scratch']
  #allocation2 [shape = 'f32[32,32]{1,0:T(8,128)}', space=vmem, size = 0x4000, scoped, tag = 'scratch operand']
  %s0 = inlined_call_operand.hbm [shape: f32[8,4,50], index: 0, kind: input, shape index: {}]
  %s1 = inlined_call_operand.hbm [shape: f32[50,128], index: 1, kind: input, shape index: {}]
  %s2 = inlined_call_operand.hbm [shape: f32[32,128], index: 2, kind: input, shape index: {}]
  %s3 = inlined_call_operand.vmem [shape: f32[1,128], index: 3, kind: input, shape index: {}]
  %s4 = inlined_call_operand.hbm [shape: f32[32,128], index: 4, kind: input, shape index: {}]
  %s5 = inlined_call_operand.vmem [shape: f32[1,128], index: 5, kind: input, shape index: {}]
  %s6 = inlined_call_operand.vmem [shape: f32[4,32], index: 6, kind: input, shape index: {}]
  %s7 = inlined_call_operand.vmem [shape: f32[4,32], index: 7, kind: input, shape index: {}]
  %s8 = inlined_call_operand.hbm [shape: f32[32,128], index: 8, kind: output, shape index: {0}]
  %s9 = inlined_call_operand.hbm [shape: f32[4,32], index: 9, kind: output, shape index: {1}]
  %s10 = inlined_call_operand.hbm [shape: f32[4,32], index: 10, kind: output, shape index: {2}]
  %11 = xla_tuple %s8, %s9, %s10
  %s12 = sld [smem:[#allocation0]]
  $region74: #{tpu_custom_call.1} parent=0
    _
  %s14 = ssub.s32 1, %s12
  %s15 = scalar_select 0, %s14, %s12
  $region1: #{tpu_custom_call.1} parent=0
    #allocation3 [shape = 'u8[16384]{0}', space=vmem, size = 0x4000, scoped, tag = 'input window, operand 0, single buffered']
    #allocation4 [shape = 's32[1]{0}', space=sflag, size = 0x4, scoped, tag = 'scoped memory for tpu_custom_call.1']
    #allocation5 [shape = 's32[1]{0}', space=sflag, size = 0x4, scoped, tag = 'scoped memory for tpu_custom_call.1']
    #allocation6 [shape = 'u8[28672]{0}', space=vmem, size = 0x7000, scoped, tag = 'input window, operand 1, single buffered']
    #allocation7 [shape = 's32[1]{0}', space=sflag, size = 0x4, scoped, tag = 'scoped memory for tpu_custom_call.1']
    #allocation8 [shape = 'u8[16384]{0}', space=vmem, size = 0x4000, scoped, tag = 'input window, operand 2, single buffered']
    #allocation9 [shape = 'u8[16384]{0}', space=vmem, size = 0x4000, scoped, tag = 'input window, operand 4, single buffered']
    #allocation10 [shape = 's32[1]{0}', space=sflag, size = 0x4, scoped, tag = 'scoped memory for tpu_custom_call.1']
    #allocation11 [shape = 'u8[16384]{0}', space=vmem, size = 0x4000, scoped, tag = 'output window, operand 0, single buffered']
    #allocation12 [shape = 'u8[2048]{0}', space=vmem, size = 0x800, scoped, tag = 'output window, operand 1, single buffered']
    #allocation13 [shape = 's32[1]{0}', space=sflag, size = 0x4, scoped, tag = 'scoped memory for tpu_custom_call.1']
    #allocation14 [shape = 'u8[2048]{0}', space=vmem, size = 0x800, scoped, tag = 'output window, operand 2, single buffered']
    %16 = vsyncpa [#allocation4], 0
    %17 = vsyncpa [#allocation7], 0
    %18 = vsyncpa [#allocation10], 0
    %19 = vsyncpa [#allocation5], 0
    %20 = vsyncpa [#allocation13], 0
    // Predicated region
    $region2: #{tpu_custom_call.1} parent=1 // pred_check
      _
    $region3: #{tpu_custom_call.1} parent=1 // pred_check_branch
      %22 = sbr.rel (0) target = $region5
    $region4: #{tpu_custom_call.1} parent=1 // pred_region
      %s24 = ssub.s32 512, 512
      %25 = vsyncadd [#allocation4], %s24
      %s26 = sshll.u32 [#allocation3], 4
      %s27 = int_to_ptr.vmem [resolvable:$true] %s26
      %32 = dma.hbm_to_vmem [thread:$0]  %s0, 512, %s27, [#allocation4], 64, 64, 4
    $region5: #{tpu_custom_call.1} parent=1 // pred_fallthru
      _
    // Predicated region
    $region6: #{tpu_custom_call.1} parent=1 // pred_check
      _
    $region7: #{tpu_custom_call.1} parent=1 // pred_check_branch
      %34 = sbr.rel (0) target = $region9
    $region8: #{tpu_custom_call.1} parent=1 // pred_region
      %s36 = ssub.s32 896, 896
      %37 = vsyncadd [#allocation7], %s36
      %s38 = sshll.u32 [#allocation6], 4
      %s39 = int_to_ptr.vmem [resolvable:$true] %s38
      %44 = dma.hbm_to_vmem [thread:$0]  %s1, 896, %s39, [#allocation7], 128, 128, 8
    $region9: #{tpu_custom_call.1} parent=1 // pred_fallthru
      _
    // Predicated region
    $region10: #{tpu_custom_call.1} parent=1 // pred_check
      _
    $region11: #{tpu_custom_call.1} parent=1 // pred_check_branch
      %46 = sbr.rel (0) target = $region13
    $region12: #{tpu_custom_call.1} parent=1 // pred_region
      %s48 = ssub.s32 512, 512
      %49 = vsyncadd [#allocation7], %s48
      %s50 = sshll.u32 [#allocation8], 4
      %s51 = int_to_ptr.vmem [resolvable:$true] %s50
      %56 = dma.hbm_to_vmem [thread:$0]  %s2, 512, %s51, [#allocation7], 128, 128, 8
    $region13: #{tpu_custom_call.1} parent=1 // pred_fallthru
      _
    // Predicated region
    $region14: #{tpu_custom_call.1} parent=1 // pred_check
      _
    $region15: #{tpu_custom_call.1} parent=1 // pred_check_branch
      %58 = sbr.rel (0) target = $region17
    $region16: #{tpu_custom_call.1} parent=1 // pred_region
      _
    $region17: #{tpu_custom_call.1} parent=1 // pred_fallthru
      _
    // Predicated region
    $region18: #{tpu_custom_call.1} parent=1 // pred_check
      _
    $region19: #{tpu_custom_call.1} parent=1 // pred_check_branch
      %60 = sbr.rel (0) target = $region21
    $region20: #{tpu_custom_call.1} parent=1 // pred_region
      %s62 = ssub.s32 512, 512
      %63 = vsyncadd [#allocation10], %s62
      %s64 = sshll.u32 [#allocation9], 4
      %s65 = int_to_ptr.vmem [resolvable:$true] %s64
      %70 = dma.hbm_to_vmem [thread:$0]  %s4, 512, %s65, [#allocation10], 128, 128, 8
    $region21: #{tpu_custom_call.1} parent=1 // pred_fallthru
      _
    // Predicated region
    $region22: #{tpu_custom_call.1} parent=1 // pred_check
      _
    $region23: #{tpu_custom_call.1} parent=1 // pred_check_branch
      %72 = sbr.rel (0) target = $region25
    $region24: #{tpu_custom_call.1} parent=1 // pred_region
      _
    $region25: #{tpu_custom_call.1} parent=1 // pred_fallthru
      _
    // Predicated region
    $region26: #{tpu_custom_call.1} parent=1 // pred_check
      _
    $region27: #{tpu_custom_call.1} parent=1 // pred_check_branch
      %74 = sbr.rel (0) target = $region29
    $region28: #{tpu_custom_call.1} parent=1 // pred_region
      _
    $region29: #{tpu_custom_call.1} parent=1 // pred_fallthru
      _
    // Predicated region
    $region30: #{tpu_custom_call.1} parent=1 // pred_check
      _
    $region31: #{tpu_custom_call.1} parent=1 // pred_check_branch
      %76 = sbr.rel (0) target = $region33
    $region32: #{tpu_custom_call.1} parent=1 // pred_region
      _
    $region33: #{tpu_custom_call.1} parent=1 // pred_fallthru
      _
    // Predicated region
    $region34: #{tpu_custom_call.1} parent=1 // pred_check
      _
    $region35: #{tpu_custom_call.1} parent=1 // pred_check_branch
      %78 = sbr.rel (0) target = $region37
    $region36: #{tpu_custom_call.1} parent=1 // pred_region
      %79 = dma.done [#allocation4], 512
    $region37: #{tpu_custom_call.1} parent=1 // pred_fallthru
      _
    // Predicated region
    $region38: #{tpu_custom_call.1} parent=1 // pred_check
      _
    $region39: #{tpu_custom_call.1} parent=1 // pred_check_branch
      %81 = sbr.rel (0) target = $region41
    $region40: #{tpu_custom_call.1} parent=1 // pred_region
      %82 = dma.done [#allocation7], 896
    $region41: #{tpu_custom_call.1} parent=1 // pred_fallthru
      _
    // Predicated region
    $region42: #{tpu_custom_call.1} parent=1 // pred_check
      _
    $region43: #{tpu_custom_call.1} parent=1 // pred_check_branch
      %84 = sbr.rel (0) target = $region45
    $region44: #{tpu_custom_call.1} parent=1 // pred_region
      %85 = dma.done [#allocation7], 512
    $region45: #{tpu_custom_call.1} parent=1 // pred_fallthru
      _
    // Predicated region
    $region46: #{tpu_custom_call.1} parent=1 // pred_check
      _
    $region47: #{tpu_custom_call.1} parent=1 // pred_check_branch
      %87 = sbr.rel (0) target = $region49
    $region48: #{tpu_custom_call.1} parent=1 // pred_region
      %88 = dma.done [#allocation10], 512
    $region49: #{tpu_custom_call.1} parent=1 // pred_fallthru
      _
    %v89 = vld [vmem:[#allocation6] sm:$0xff]
    %v90 = vld [vmem:[#allocation6 + $0x8] sm:$0xff]
    %v91 = vld [vmem:[#allocation6 + $0x10] sm:$0xff]
    %v92 = vld [vmem:[#allocation6 + $0x18] sm:$0xff]
    %v93 = vld [vmem:[#allocation6 + $0x20] sm:$0xff]
    %v94 = vld [vmem:[#allocation6 + $0x28] sm:$0xff]
    %v95 = vld [vmem:[#allocation6 + $0x30] sm:$0x3]
    %v96 = vld [vmem:[#allocation8] sm:$0xff]
    %v97 = vld [vmem:[#allocation8 + $0x8] sm:$0xff]
    %v98 = vld [vmem:[#allocation8 + $0x10] sm:$0xff]
    %v99 = vld [vmem:[#allocation8 + $0x18] sm:$0xff]
    %v100 = vld [vmem:[%s3] sm:$0x1]
    %v101 = vld [vmem:[%s6] sm:$0xf]
    %v102 = vld [vmem:[%s7] sm:$0xf]
    %v103 = vld [vmem:[#allocation3] sm:$0xf]
    %vm104 = vcmask 261120
    %v106 = vsel %vm104, %v101, 0
    %108 = vmatprep.subr.mxu0 0.0
    %109 = vmatpush1.msra.mxu0 %v96
    %110 = vmatprep.subr.mxu0 0.0
    %111 = vmatpush1.msra.mxu0 %v97
    %112 = vmatprep.subr.mxu0 0.0
    %113 = vmatpush1.msra.mxu0 %v98
    %114 = vmatprep.subr.mxu0 0.0
    %115 = vmatpush1.msra.mxu0 %v99
    %116 = vmatprep.subr.mxu0 0.0
    %117 = vmatpush1.msra.mxu0 0.0
    %118 = vmatprep.subr.mxu0 0.0
    %119 = vmatpush1.msra.mxu0 0.0
    %120 = vmatprep.subr.mxu0 0.0
    %121 = vmatpush1.msra.mxu0 0.0
    %122 = vmatprep.subr.mxu0 0.0
    %123 = vmatpush1.msra.mxu0 0.0
    %124 = vmatprep.subr.mxu0 0.0
    %125 = vmatpush1.msra.mxu0 0.0
    %126 = vmatprep.subr.mxu0 0.0
    %127 = vmatpush1.msra.mxu0 0.0
    %128 = vmatprep.subr.mxu0 0.0
    %129 = vmatpush1.msra.mxu0 0.0
    %130 = vmatprep.subr.mxu0 0.0
    %131 = vmatpush1.msra.mxu0 0.0
    %132 = vmatprep.subr.mxu0 0.0
    %133 = vmatpush1.msra.mxu0 0.0
    %134 = vmatprep.subr.mxu0 0.0
    %135 = vmatpush1.msra.mxu0 0.0
    %136 = vmatprep.subr.mxu0 0.0
    %137 = vmatpush1.msra.mxu0 0.0
    %138 = vmatprep.subr.mxu0 0.0
    %139 = vmatpush1.msra.mxu0 0.0
    %140 = vmatprep.subr.mxu0 0.0
    %141 = vmatpush1.msra.mxu0 0.0
    %142 = vmatprep.subr.mxu0 0.0
    %143 = vmatpush1.msra.mxu0 0.0
    %144 = vmatprep.subr.mxu0 0.0
    %145 = vmatpush1.msra.mxu0 0.0
    %146 = vmatprep.subr.mxu0 0.0
    %147 = vmatpush1.msra.mxu0 0.0
    %148 = vmatprep.subr.mxu0 0.0
    %149 = vmatpush1.msra.mxu0 0.0
    %150 = vmatprep.subr.mxu0 0.0
    %151 = vmatpush1.msra.mxu0 0.0
    %152 = vmatprep.subr.mxu0 0.0
    %153 = vmatpush1.msra.mxu0 0.0
    %154 = vmatprep.subr.mxu0 0.0
    %155 = vmatpush1.msra.mxu0 0.0
    %156 = vmatprep.subr.mxu0 0.0
    %157 = vmatpush1.msra.mxu0 0.0
    %158 = vmatprep.subr.mxu0 0.0
    %159 = vmatpush1.msra.mxu0 0.0
    %160 = vmatprep.subr.mxu0 0.0
    %161 = vmatpush1.msra.mxu0 0.0
    %162 = vmatprep.subr.mxu0 0.0
    %163 = vmatpush1.msra.mxu0 0.0
    %164 = vmatprep.subr.mxu0 0.0
    %165 = vmatpush1.msra.mxu0 0.0
    %166 = vmatprep.subr.mxu0 0.0
    %167 = vmatpush1.msra.mxu0 0.0
    %168 = vmatprep.subr.mxu0 0.0
    %169 = vmatpush1.msra.mxu0 0.0
    %170 = vmatprep.subr.mxu0 0.0
    %171 = vmatpush1.msra.mxu0 0.0
    %172 = vmatprep.mubr.f32.mxu0 0.0
    %173 = vmatmul.mubr.f32.gmra.mrb[0].mxu0 %v106
    %v174 = vpop.f32.mrb[0].mxu0
    %v175 = vadd.f32 0.0, %v174
    %v176 = vpop.f32.mrb[0].mxu0
    %177 = vdwg.mxu0
    %vm178 = vcmask 408576
    %v180 = vsel %vm178, %v103, 0
    %vm182 = vcmask 1041408
    %v184 = vsel %vm182, %v95, 0
    %186 = vmatprep.subr.mxu0 0.0
    %187 = vmatpush1.msra.mxu0 %v89
    %188 = vmatprep.subr.mxu0 0.0
    %189 = vmatpush1.msra.mxu0 %v90
    %190 = vmatprep.subr.mxu0 0.0
    %191 = vmatpush1.msra.mxu0 %v91
    %192 = vmatprep.subr.mxu0 0.0
    %193 = vmatpush1.msra.mxu0 %v92
    %194 = vmatprep.subr.mxu0 0.0
    %195 = vmatpush1.msra.mxu0 %v93
    %196 = vmatprep.subr.mxu0 0.0
    %197 = vmatpush1.msra.mxu0 %v94
    %198 = vmatprep.subr.mxu0 0.0
    %199 = vmatpush1.msra.mxu0 %v184
    %200 = vmatprep.subr.mxu0 0.0
    %201 = vmatpush1.msra.mxu0 0.0
    %202 = vmatprep.subr.mxu0 0.0
    %203 = vmatpush1.msra.mxu0 0.0
    %204 = vmatprep.subr.mxu0 0.0
    %205 = vmatpush1.msra.mxu0 0.0
    %206 = vmatprep.subr.mxu0 0.0
    %207 = vmatpush1.msra.mxu0 0.0
    %208 = vmatprep.subr.mxu0 0.0
    %209 = vmatpush1.msra.mxu0 0.0
    %210 = vmatprep.subr.mxu0 0.0
    %211 = vmatpush1.msra.mxu0 0.0
    %212 = vmatprep.subr.mxu0 0.0
    %213 = vmatpush1.msra.mxu0 0.0
    %214 = vmatprep.subr.mxu0 0.0
    %215 = vmatpush1.msra.mxu0 0.0
    %216 = vmatprep.subr.mxu0 0.0
    %217 = vmatpush1.msra.mxu0 0.0
    %218 = vmatprep.subr.mxu0 0.0
    %219 = vmatpush1.msra.mxu0 0.0
    %220 = vmatprep.subr.mxu0 0.0
    %221 = vmatpush1.msra.mxu0 0.0
    %222 = vmatprep.subr.mxu0 0.0
    %223 = vmatpush1.msra.mxu0 0.0
    %224 = vmatprep.subr.mxu0 0.0
    %225 = vmatpush1.msra.mxu0 0.0
    %226 = vmatprep.subr.mxu0 0.0
    %227 = vmatpush1.msra.mxu0 0.0
    %228 = vmatprep.subr.mxu0 0.0
    %229 = vmatpush1.msra.mxu0 0.0
    %230 = vmatprep.subr.mxu0 0.0
    %231 = vmatpush1.msra.mxu0 0.0
    %232 = vmatprep.subr.mxu0 0.0
    %233 = vmatpush1.msra.mxu0 0.0
    %234 = vmatprep.subr.mxu0 0.0
    %235 = vmatpush1.msra.mxu0 0.0
    %236 = vmatprep.subr.mxu0 0.0
    %237 = vmatpush1.msra.mxu0 0.0
    %238 = vmatprep.subr.mxu0 0.0
    %239 = vmatpush1.msra.mxu0 0.0
    %240 = vmatprep.subr.mxu0 0.0
    %241 = vmatpush1.msra.mxu0 0.0
    %242 = vmatprep.subr.mxu0 0.0
    %243 = vmatpush1.msra.mxu0 0.0
    %244 = vmatprep.subr.mxu0 0.0
    %245 = vmatpush1.msra.mxu0 0.0
    %246 = vmatprep.subr.mxu0 0.0
    %247 = vmatpush1.msra.mxu0 0.0
    %248 = vmatprep.subr.mxu0 0.0
    %249 = vmatpush1.msra.mxu0 0.0
    %250 = vmatprep.mubr.f32.mxu0 0.0
    %251 = vmatmul.mubr.f32.gmra.mrb[0].mxu0 %v180
    %v252 = vpop.f32.mrb[0].mxu0
    %v253 = vadd.f32 %v175, %v252
    %v254 = vpop.f32.mrb[0].mxu0
    %255 = vdwg.mxu0
    %v257 = vlaneseq
    %v258 = vshrl.u32 %v257, 7
    %v259 = vsub.s32 0, %v258
    %v260 = vrot.slane %v100, %v259
    %v262 = vadd.f32 %v253, %v260
    %v263 = vxor.u32 %v262, 2147483648
    %v264 = vmul.f32 %v263, 1.442695
    %v265 = vpow.pop %v264
    %v266 = vadd.f32 %v265, 1.0
    %v267 = vrcp.pop %v266
    %v268 = vmul.f32 1.0, %v267
    %v269 = vtanh.pop %v262
    %271 = vrot.lane.b32.xlu0 %v102, 32
    %v272 = vpop.permute.xlu0 %271
    %v274 = vmul.f32 %v268, %v272
    %276 = vrot.lane.b32.xlu0 %v269, 64
    %v277 = vpop.permute.xlu0 %276
    %v279 = vmul.f32 %v268, %v277
    %281 = vrot.lane.b32.xlu0 %v279, 32
    %v282 = vpop.permute.xlu0 %281
    %v284 = vadd.f32 %v274, %v282
    %v285 = vtanh.pop %v284
    %287 = vrot.lane.b32.xlu0 %v285, 64
    %v288 = vpop.permute.xlu0 %287
    %v290 = vmul.f32 %v268, %v288
    %292 = vrot.lane.b32.xlu0 %v290, 32
    %v293 = vpop.permute.xlu0 %292
    %vm295 = vcmask 257024
    %296 = vst.msk [vmem:[#allocation2] sm:$0xf] %vm295, %v293
    %s297 = scalar_lea.vmem [#allocation3], 4
    %v298 = vld [vmem:[%s297] sm:$0xf]
    %v299 = vsel %vm104, %v293, 0
    %301 = vmatprep.subr.mxu0 0.0
    %302 = vmatpush1.msra.mxu0 %v96
    %303 = vmatprep.subr.mxu0 0.0
    %304 = vmatpush1.msra.mxu0 %v97
    %305 = vmatprep.subr.mxu0 0.0
    %306 = vmatpush1.msra.mxu0 %v98
    %307 = vmatprep.subr.mxu0 0.0
    %308 = vmatpush1.msra.mxu0 %v99
    %309 = vmatprep.subr.mxu0 0.0
    %310 = vmatpush1.msra.mxu0 0.0
    %311 = vmatprep.subr.mxu0 0.0
    %312 = vmatpush1.msra.mxu0 0.0
    %313 = vmatprep.subr.mxu0 0.0
    %314 = vmatpush1.msra.mxu0 0.0
    %315 = vmatprep.subr.mxu0 0.0
    %316 = vmatpush1.msra.mxu0 0.0
    %317 = vmatprep.subr.mxu0 0.0
    %318 = vmatpush1.msra.mxu0 0.0
    %319 = vmatprep.subr.mxu0 0.0
    %320 = vmatpush1.msra.mxu0 0.0
    %321 = vmatprep.subr.mxu0 0.0
    %322 = vmatpush1.msra.mxu0 0.0
    %323 = vmatprep.subr.mxu0 0.0
    %324 = vmatpush1.msra.mxu0 0.0
    %325 = vmatprep.subr.mxu0 0.0
    %326 = vmatpush1.msra.mxu0 0.0
    %327 = vmatprep.subr.mxu0 0.0
    %328 = vmatpush1.msra.mxu0 0.0
    %329 = vmatprep.subr.mxu0 0.0
    %330 = vmatpush1.msra.mxu0 0.0
    %331 = vmatprep.subr.mxu0 0.0
    %332 = vmatpush1.msra.mxu0 0.0
    %333 = vmatprep.subr.mxu0 0.0
    %334 = vmatpush1.msra.mxu0 0.0
    %335 = vmatprep.subr.mxu0 0.0
    %336 = vmatpush1.msra.mxu0 0.0
    %337 = vmatprep.subr.mxu0 0.0
    %338 = vmatpush1.msra.mxu0 0.0
    %339 = vmatprep.subr.mxu0 0.0
    %340 = vmatpush1.msra.mxu0 0.0
    %341 = vmatprep.subr.mxu0 0.0
    %342 = vmatpush1.msra.mxu0 0.0
    %343 = vmatprep.subr.mxu0 0.0
    %344 = vmatpush1.msra.mxu0 0.0
    %345 = vmatprep.subr.mxu0 0.0
    %346 = vmatpush1.msra.mxu0 0.0
    %347 = vmatprep.subr.mxu0 0.0
    %348 = vmatpush1.msra.mxu0 0.0
    %349 = vmatprep.subr.mxu0 0.0
    %350 = vmatpush1.msra.mxu0 0.0
    %351 = vmatprep.subr.mxu0 0.0
    %352 = vmatpush1.msra.mxu0 0.0
    %353 = vmatprep.subr.mxu0 0.0
    %354 = vmatpush1.msra.mxu0 0.0
    %355 = vmatprep.subr.mxu0 0.0
    %356 = vmatpush1.msra.mxu0 0.0
    %357 = vmatprep.subr.mxu0 0.0
    %358 = vmatpush1.msra.mxu0 0.0
    %359 = vmatprep.subr.mxu0 0.0
    %360 = vmatpush1.msra.mxu0 0.0
    %361 = vmatprep.subr.mxu0 0.0
    %362 = vmatpush1.msra.mxu0 0.0
    %363 = vmatprep.subr.mxu0 0.0
    %364 = vmatpush1.msra.mxu0 0.0
    %365 = vmatprep.mubr.f32.mxu0 0.0
    %366 = vmatmul.mubr.f32.gmra.mrb[0].mxu0 %v299
    %v367 = vpop.f32.mrb[0].mxu0
    %v368 = vadd.f32 0.0, %v367
    %v369 = vpop.f32.mrb[0].mxu0
    %370 = vdwg.mxu0
    %v372 = vsel %vm178, %v298, 0
    %374 = vmatprep.subr.mxu0 0.0
    %375 = vmatpush1.msra.mxu0 %v89
    %376 = vmatprep.subr.mxu0 0.0
    %377 = vmatpush1.msra.mxu0 %v90
    %378 = vmatprep.subr.mxu0 0.0
    %379 = vmatpush1.msra.mxu0 %v91
    %380 = vmatprep.subr.mxu0 0.0
    %381 = vmatpush1.msra.mxu0 %v92
    %382 = vmatprep.subr.mxu0 0.0
    %383 = vmatpush1.msra.mxu0 %v93
    %384 = vmatprep.subr.mxu0 0.0
    %385 = vmatpush1.msra.mxu0 %v94
    %386 = vmatprep.subr.mxu0 0.0
    %387 = vmatpush1.msra.mxu0 %v184
    %388 = vmatprep.subr.mxu0 0.0
    %389 = vmatpush1.msra.mxu0 0.0
    %390 = vmatprep.subr.mxu0 0.0
    %391 = vmatpush1.msra.mxu0 0.0
    %392 = vmatprep.subr.mxu0 0.0
    %393 = vmatpush1.msra.mxu0 0.0
    %394 = vmatprep.subr.mxu0 0.0
    %395 = vmatpush1.msra.mxu0 0.0
    %396 = vmatprep.subr.mxu0 0.0
    %397 = vmatpush1.msra.mxu0 0.0
    %398 = vmatprep.subr.mxu0 0.0
    %399 = vmatpush1.msra.mxu0 0.0
    %400 = vmatprep.subr.mxu0 0.0
    %401 = vmatpush1.msra.mxu0 0.0
    %402 = vmatprep.subr.mxu0 0.0
    %403 = vmatpush1.msra.mxu0 0.0
    %404 = vmatprep.subr.mxu0 0.0
    %405 = vmatpush1.msra.mxu0 0.0
    %406 = vmatprep.subr.mxu0 0.0
    %407 = vmatpush1.msra.mxu0 0.0
    %408 = vmatprep.subr.mxu0 0.0
    %409 = vmatpush1.msra.mxu0 0.0
    %410 = vmatprep.subr.mxu0 0.0
    %411 = vmatpush1.msra.mxu0 0.0
    %412 = vmatprep.subr.mxu0 0.0
    %413 = vmatpush1.msra.mxu0 0.0
    %414 = vmatprep.subr.mxu0 0.0
    %415 = vmatpush1.msra.mxu0 0.0
    %416 = vmatprep.subr.mxu0 0.0
    %417 = vmatpush1.msra.mxu0 0.0
    %418 = vmatprep.subr.mxu0 0.0
    %419 = vmatpush1.msra.mxu0 0.0
    %420 = vmatprep.subr.mxu0 0.0
    %421 = vmatpush1.msra.mxu0 0.0
    %422 = vmatprep.subr.mxu0 0.0
    %423 = vmatpush1.msra.mxu0 0.0
    %424 = vmatprep.subr.mxu0 0.0
    %425 = vmatpush1.msra.mxu0 0.0
    %426 = vmatprep.subr.mxu0 0.0
    %427 = vmatpush1.msra.mxu0 0.0
    %428 = vmatprep.subr.mxu0 0.0
    %429 = vmatpush1.msra.mxu0 0.0
    %430 = vmatprep.subr.mxu0 0.0
    %431 = vmatpush1.msra.mxu0 0.0
    %432 = vmatprep.subr.mxu0 0.0
    %433 = vmatpush1.msra.mxu0 0.0
    %434 = vmatprep.subr.mxu0 0.0
    %435 = vmatpush1.msra.mxu0 0.0
    %436 = vmatprep.subr.mxu0 0.0
    %437 = vmatpush1.msra.mxu0 0.0
    %438 = vmatprep.mubr.f32.mxu0 0.0
    %439 = vmatmul.mubr.f32.gmra.mrb[0].mxu0 %v372
    %v440 = vpop.f32.mrb[0].mxu0
    %v441 = vadd.f32 %v368, %v440
    %v442 = vpop.f32.mrb[0].mxu0
    %443 = vdwg.mxu0
    %v444 = vadd.f32 %v441, %v260
    %v445 = vxor.u32 %v444, 2147483648
    %v446 = vmul.f32 %v445, 1.442695
    %v447 = vpow.pop %v446
    %v448 = vadd.f32 %v447, 1.0
    %v449 = vrcp.pop %v448
    %v450 = vmul.f32 1.0, %v449
    %v451 = vtanh.pop %v444
    %v452 = vmul.f32 %v450, %v284
    %454 = vrot.lane.b32.xlu0 %v451, 64
    %v455 = vpop.permute.xlu0 %454
    %v457 = vmul.f32 %v450, %v455
    %459 = vrot.lane.b32.xlu0 %v457, 32
    %v460 = vpop.permute.xlu0 %459
    %v462 = vadd.f32 %v452, %v460
    %v463 = vtanh.pop %v462
    %465 = vrot.lane.b32.xlu0 %v463, 64
    %v466 = vpop.permute.xlu0 %465
    %v468 = vmul.f32 %v450, %v466
    %470 = vrot.lane.b32.xlu0 %v468, 32
    %v471 = vpop.permute.xlu0 %470
    %473 = vst.msk [vmem:[#allocation2 + $0x4] sm:$0xf] %vm295, %v471
    %s474 = scalar_lea.vmem [#allocation3], 8
    %v475 = vld [vmem:[%s474] sm:$0xf]
    %v476 = vsel %vm104, %v471, 0
    %478 = vmatprep.subr.mxu0 0.0
    %479 = vmatpush1.msra.mxu0 %v96
    %480 = vmatprep.subr.mxu0 0.0
    %481 = vmatpush1.msra.mxu0 %v97
    %482 = vmatprep.subr.mxu0 0.0
    %483 = vmatpush1.msra.mxu0 %v98
    %484 = vmatprep.subr.mxu0 0.0
    %485 = vmatpush1.msra.mxu0 %v99
    %486 = vmatprep.subr.mxu0 0.0
    %487 = vmatpush1.msra.mxu0 0.0
    %488 = vmatprep.subr.mxu0 0.0
    %489 = vmatpush1.msra.mxu0 0.0
    %490 = vmatprep.subr.mxu0 0.0
    %491 = vmatpush1.msra.mxu0 0.0
    %492 = vmatprep.subr.mxu0 0.0
    %493 = vmatpush1.msra.mxu0 0.0
    %494 = vmatprep.subr.mxu0 0.0
    %495 = vmatpush1.msra.mxu0 0.0
    %496 = vmatprep.subr.mxu0 0.0
    %497 = vmatpush1.msra.mxu0 0.0
    %498 = vmatprep.subr.mxu0 0.0
    %499 = vmatpush1.msra.mxu0 0.0
    %500 = vmatprep.subr.mxu0 0.0
    %501 = vmatpush1.msra.mxu0 0.0
    %502 = vmatprep.subr.mxu0 0.0
    %503 = vmatpush1.msra.mxu0 0.0
    %504 = vmatprep.subr.mxu0 0.0
    %505 = vmatpush1.msra.mxu0 0.0
    %506 = vmatprep.subr.mxu0 0.0
    %507 = vmatpush1.msra.mxu0 0.0
    %508 = vmatprep.subr.mxu0 0.0
    %509 = vmatpush1.msra.mxu0 0.0
    %510 = vmatprep.subr.mxu0 0.0
    %511 = vmatpush1.msra.mxu0 0.0
    %512 = vmatprep.subr.mxu0 0.0
    %513 = vmatpush1.msra.mxu0 0.0
    %514 = vmatprep.subr.mxu0 0.0
    %515 = vmatpush1.msra.mxu0 0.0
    %516 = vmatprep.subr.mxu0 0.0
    %517 = vmatpush1.msra.mxu0 0.0
    %518 = vmatprep.subr.mxu0 0.0
    %519 = vmatpush1.msra.mxu0 0.0
    %520 = vmatprep.subr.mxu0 0.0
    %521 = vmatpush1.msra.mxu0 0.0
    %522 = vmatprep.subr.mxu0 0.0
    %523 = vmatpush1.msra.mxu0 0.0
    %524 = vmatprep.subr.mxu0 0.0
    %525 = vmatpush1.msra.mxu0 0.0
    %526 = vmatprep.subr.mxu0 0.0
    %527 = vmatpush1.msra.mxu0 0.0
    %528 = vmatprep.subr.mxu0 0.0
    %529 = vmatpush1.msra.mxu0 0.0
    %530 = vmatprep.subr.mxu0 0.0
    %531 = vmatpush1.msra.mxu0 0.0
    %532 = vmatprep.subr.mxu0 0.0
    %533 = vmatpush1.msra.mxu0 0.0
    %534 = vmatprep.subr.mxu0 0.0
    %535 = vmatpush1.msra.mxu0 0.0
    %536 = vmatprep.subr.mxu0 0.0
    %537 = vmatpush1.msra.mxu0 0.0
    %538 = vmatprep.subr.mxu0 0.0
    %539 = vmatpush1.msra.mxu0 0.0
    %540 = vmatprep.subr.mxu0 0.0
    %541 = vmatpush1.msra.mxu0 0.0
    %542 = vmatprep.mubr.f32.mxu0 0.0
    %543 = vmatmul.mubr.f32.gmra.mrb[0].mxu0 %v476
    %v544 = vpop.f32.mrb[0].mxu0
    %v545 = vadd.f32 0.0, %v544
    %v546 = vpop.f32.mrb[0].mxu0
    %547 = vdwg.mxu0
    %v549 = vsel %vm178, %v475, 0
    %551 = vmatprep.subr.mxu0 0.0
    %552 = vmatpush1.msra.mxu0 %v89
    %553 = vmatprep.subr.mxu0 0.0
    %554 = vmatpush1.msra.mxu0 %v90
    %555 = vmatprep.subr.mxu0 0.0
    %556 = vmatpush1.msra.mxu0 %v91
    %557 = vmatprep.subr.mxu0 0.0
    %558 = vmatpush1.msra.mxu0 %v92
    %559 = vmatprep.subr.mxu0 0.0
    %560 = vmatpush1.msra.mxu0 %v93
    %561 = vmatprep.subr.mxu0 0.0
    %562 = vmatpush1.msra.mxu0 %v94
    %563 = vmatprep.subr.mxu0 0.0
    %564 = vmatpush1.msra.mxu0 %v184
    %565 = vmatprep.subr.mxu0 0.0
    %566 = vmatpush1.msra.mxu0 0.0
    %567 = vmatprep.subr.mxu0 0.0
    %568 = vmatpush1.msra.mxu0 0.0
    %569 = vmatprep.subr.mxu0 0.0
    %570 = vmatpush1.msra.mxu0 0.0
    %571 = vmatprep.subr.mxu0 0.0
    %572 = vmatpush1.msra.mxu0 0.0
    %573 = vmatprep.subr.mxu0 0.0
    %574 = vmatpush1.msra.mxu0 0.0
    %575 = vmatprep.subr.mxu0 0.0
    %576 = vmatpush1.msra.mxu0 0.0
    %577 = vmatprep.subr.mxu0 0.0
    %578 = vmatpush1.msra.mxu0 0.0
    %579 = vmatprep.subr.mxu0 0.0
    %580 = vmatpush1.msra.mxu0 0.0
    %581 = vmatprep.subr.mxu0 0.0
    %582 = vmatpush1.msra.mxu0 0.0
    %583 = vmatprep.subr.mxu0 0.0
    %584 = vmatpush1.msra.mxu0 0.0
    %585 = vmatprep.subr.mxu0 0.0
    %586 = vmatpush1.msra.mxu0 0.0
    %587 = vmatprep.subr.mxu0 0.0
    %588 = vmatpush1.msra.mxu0 0.0
    %589 = vmatprep.subr.mxu0 0.0
    %590 = vmatpush1.msra.mxu0 0.0
    %591 = vmatprep.subr.mxu0 0.0
    %592 = vmatpush1.msra.mxu0 0.0
    %593 = vmatprep.subr.mxu0 0.0
    %594 = vmatpush1.msra.mxu0 0.0
    %595 = vmatprep.subr.mxu0 0.0
    %596 = vmatpush1.msra.mxu0 0.0
    %597 = vmatprep.subr.mxu0 0.0
    %598 = vmatpush1.msra.mxu0 0.0
    %599 = vmatprep.subr.mxu0 0.0
    %600 = vmatpush1.msra.mxu0 0.0
    %601 = vmatprep.subr.mxu0 0.0
    %602 = vmatpush1.msra.mxu0 0.0
    %603 = vmatprep.subr.mxu0 0.0
    %604 = vmatpush1.msra.mxu0 0.0
    %605 = vmatprep.subr.mxu0 0.0
    %606 = vmatpush1.msra.mxu0 0.0
    %607 = vmatprep.subr.mxu0 0.0
    %608 = vmatpush1.msra.mxu0 0.0
    %609 = vmatprep.subr.mxu0 0.0
    %610 = vmatpush1.msra.mxu0 0.0
    %611 = vmatprep.subr.mxu0 0.0
    %612 = vmatpush1.msra.mxu0 0.0
    %613 = vmatprep.subr.mxu0 0.0
    %614 = vmatpush1.msra.mxu0 0.0
    %615 = vmatprep.mubr.f32.mxu0 0.0
    %616 = vmatmul.mubr.f32.gmra.mrb[0].mxu0 %v549
    %v617 = vpop.f32.mrb[0].mxu0
    %v618 = vadd.f32 %v545, %v617
    %v619 = vpop.f32.mrb[0].mxu0
    %620 = vdwg.mxu0
    %v621 = vadd.f32 %v618, %v260
    %v622 = vxor.u32 %v621, 2147483648
    %v623 = vmul.f32 %v622, 1.442695
    %v624 = vpow.pop %v623
    %v625 = vadd.f32 %v624, 1.0
    %v626 = vrcp.pop %v625
    %v627 = vmul.f32 1.0, %v626
    %v628 = vtanh.pop %v621
    %v629 = vmul.f32 %v627, %v462
    %631 = vrot.lane.b32.xlu0 %v628, 64
    %v632 = vpop.permute.xlu0 %631
    %v634 = vmul.f32 %v627, %v632
    %636 = vrot.lane.b32.xlu0 %v634, 32
    %v637 = vpop.permute.xlu0 %636
    %v639 = vadd.f32 %v629, %v637
    %v640 = vtanh.pop %v639
    %642 = vrot.lane.b32.xlu0 %v640, 64
    %v643 = vpop.permute.xlu0 %642
    %v645 = vmul.f32 %v627, %v643
    %647 = vrot.lane.b32.xlu0 %v645, 32
    %v648 = vpop.permute.xlu0 %647
    %650 = vst.msk [vmem:[#allocation2 + $0x8] sm:$0xf] %vm295, %v648
    %s651 = scalar_lea.vmem [#allocation3], 12
    %v652 = vld [vmem:[%s651] sm:$0xf]
    %v653 = vsel %vm104, %v648, 0
    %655 = vmatprep.subr.mxu0 0.0
    %656 = vmatpush1.msra.mxu0 %v96
    %657 = vmatprep.subr.mxu0 0.0
    %658 = vmatpush1.msra.mxu0 %v97
    %659 = vmatprep.subr.mxu0 0.0
    %660 = vmatpush1.msra.mxu0 %v98
    %661 = vmatprep.subr.mxu0 0.0
    %662 = vmatpush1.msra.mxu0 %v99
    %663 = vmatprep.subr.mxu0 0.0
    %664 = vmatpush1.msra.mxu0 0.0
    %665 = vmatprep.subr.mxu0 0.0
    %666 = vmatpush1.msra.mxu0 0.0
    %667 = vmatprep.subr.mxu0 0.0
    %668 = vmatpush1.msra.mxu0 0.0
    %669 = vmatprep.subr.mxu0 0.0
    %670 = vmatpush1.msra.mxu0 0.0
    %671 = vmatprep.subr.mxu0 0.0
    %672 = vmatpush1.msra.mxu0 0.0
    %673 = vmatprep.subr.mxu0 0.0
    %674 = vmatpush1.msra.mxu0 0.0
    %675 = vmatprep.subr.mxu0 0.0
    %676 = vmatpush1.msra.mxu0 0.0
    %677 = vmatprep.subr.mxu0 0.0
    %678 = vmatpush1.msra.mxu0 0.0
    %679 = vmatprep.subr.mxu0 0.0
    %680 = vmatpush1.msra.mxu0 0.0
    %681 = vmatprep.subr.mxu0 0.0
    %682 = vmatpush1.msra.mxu0 0.0
    %683 = vmatprep.subr.mxu0 0.0
    %684 = vmatpush1.msra.mxu0 0.0
    %685 = vmatprep.subr.mxu0 0.0
    %686 = vmatpush1.msra.mxu0 0.0
    %687 = vmatprep.subr.mxu0 0.0
    %688 = vmatpush1.msra.mxu0 0.0
    %689 = vmatprep.subr.mxu0 0.0
    %690 = vmatpush1.msra.mxu0 0.0
    %691 = vmatprep.subr.mxu0 0.0
    %692 = vmatpush1.msra.mxu0 0.0
    %693 = vmatprep.subr.mxu0 0.0
    %694 = vmatpush1.msra.mxu0 0.0
    %695 = vmatprep.subr.mxu0 0.0
    %696 = vmatpush1.msra.mxu0 0.0
    %697 = vmatprep.subr.mxu0 0.0
    %698 = vmatpush1.msra.mxu0 0.0
    %699 = vmatprep.subr.mxu0 0.0
    %700 = vmatpush1.msra.mxu0 0.0
    %701 = vmatprep.subr.mxu0 0.0
    %702 = vmatpush1.msra.mxu0 0.0
    %703 = vmatprep.subr.mxu0 0.0
    %704 = vmatpush1.msra.mxu0 0.0
    %705 = vmatprep.subr.mxu0 0.0
    %706 = vmatpush1.msra.mxu0 0.0
    %707 = vmatprep.subr.mxu0 0.0
    %708 = vmatpush1.msra.mxu0 0.0
    %709 = vmatprep.subr.mxu0 0.0
    %710 = vmatpush1.msra.mxu0 0.0
    %711 = vmatprep.subr.mxu0 0.0
    %712 = vmatpush1.msra.mxu0 0.0
    %713 = vmatprep.subr.mxu0 0.0
    %714 = vmatpush1.msra.mxu0 0.0
    %715 = vmatprep.subr.mxu0 0.0
    %716 = vmatpush1.msra.mxu0 0.0
    %717 = vmatprep.subr.mxu0 0.0
    %718 = vmatpush1.msra.mxu0 0.0
    %719 = vmatprep.mubr.f32.mxu0 0.0
    %720 = vmatmul.mubr.f32.gmra.mrb[0].mxu0 %v653
    %v721 = vpop.f32.mrb[0].mxu0
    %v722 = vadd.f32 0.0, %v721
    %v723 = vpop.f32.mrb[0].mxu0
    %724 = vdwg.mxu0
    %v726 = vsel %vm178, %v652, 0
    %728 = vmatprep.subr.mxu0 0.0
    %729 = vmatpush1.msra.mxu0 %v89
    %730 = vmatprep.subr.mxu0 0.0
    %731 = vmatpush1.msra.mxu0 %v90
    %732 = vmatprep.subr.mxu0 0.0
    %733 = vmatpush1.msra.mxu0 %v91
    %734 = vmatprep.subr.mxu0 0.0
    %735 = vmatpush1.msra.mxu0 %v92
    %736 = vmatprep.subr.mxu0 0.0
    %737 = vmatpush1.msra.mxu0 %v93
    %738 = vmatprep.subr.mxu0 0.0
    %739 = vmatpush1.msra.mxu0 %v94
    %740 = vmatprep.subr.mxu0 0.0
    %741 = vmatpush1.msra.mxu0 %v184
    %742 = vmatprep.subr.mxu0 0.0
    %743 = vmatpush1.msra.mxu0 0.0
    %744 = vmatprep.subr.mxu0 0.0
    %745 = vmatpush1.msra.mxu0 0.0
    %746 = vmatprep.subr.mxu0 0.0
    %747 = vmatpush1.msra.mxu0 0.0
    %748 = vmatprep.subr.mxu0 0.0
    %749 = vmatpush1.msra.mxu0 0.0
    %750 = vmatprep.subr.mxu0 0.0
    %751 = vmatpush1.msra.mxu0 0.0
    %752 = vmatprep.subr.mxu0 0.0
    %753 = vmatpush1.msra.mxu0 0.0
    %754 = vmatprep.subr.mxu0 0.0
    %755 = vmatpush1.msra.mxu0 0.0
    %756 = vmatprep.subr.mxu0 0.0
    %757 = vmatpush1.msra.mxu0 0.0
    %758 = vmatprep.subr.mxu0 0.0
    %759 = vmatpush1.msra.mxu0 0.0
    %760 = vmatprep.subr.mxu0 0.0
    %761 = vmatpush1.msra.mxu0 0.0
    %762 = vmatprep.subr.mxu0 0.0
    %763 = vmatpush1.msra.mxu0 0.0
    %764 = vmatprep.subr.mxu0 0.0
    %765 = vmatpush1.msra.mxu0 0.0
    %766 = vmatprep.subr.mxu0 0.0
    %767 = vmatpush1.msra.mxu0 0.0
    %768 = vmatprep.subr.mxu0 0.0
    %769 = vmatpush1.msra.mxu0 0.0
    %770 = vmatprep.subr.mxu0 0.0
    %771 = vmatpush1.msra.mxu0 0.0
    %772 = vmatprep.subr.mxu0 0.0
    %773 = vmatpush1.msra.mxu0 0.0
    %774 = vmatprep.subr.mxu0 0.0
    %775 = vmatpush1.msra.mxu0 0.0
    %776 = vmatprep.subr.mxu0 0.0
    %777 = vmatpush1.msra.mxu0 0.0
    %778 = vmatprep.subr.mxu0 0.0
    %779 = vmatpush1.msra.mxu0 0.0
    %780 = vmatprep.subr.mxu0 0.0
    %781 = vmatpush1.msra.mxu0 0.0
    %782 = vmatprep.subr.mxu0 0.0
    %783 = vmatpush1.msra.mxu0 0.0
    %784 = vmatprep.subr.mxu0 0.0
    %785 = vmatpush1.msra.mxu0 0.0
    %786 = vmatprep.subr.mxu0 0.0
    %787 = vmatpush1.msra.mxu0 0.0
    %788 = vmatprep.subr.mxu0 0.0
    %789 = vmatpush1.msra.mxu0 0.0
    %790 = vmatprep.subr.mxu0 0.0
    %791 = vmatpush1.msra.mxu0 0.0
    %792 = vmatprep.mubr.f32.mxu0 0.0
    %793 = vmatmul.mubr.f32.gmra.mrb[0].mxu0 %v726
    %v794 = vpop.f32.mrb[0].mxu0
    %v795 = vadd.f32 %v722, %v794
    %v796 = vpop.f32.mrb[0].mxu0
    %797 = vdwg.mxu0
    %v798 = vadd.f32 %v795, %v260
    %v799 = vxor.u32 %v798, 2147483648
    %v800 = vmul.f32 %v799, 1.442695
    %v801 = vpow.pop %v800
    %v802 = vadd.f32 %v801, 1.0
    %v803 = vrcp.pop %v802
    %v804 = vmul.f32 1.0, %v803
    %v805 = vtanh.pop %v798
    %v806 = vmul.f32 %v804, %v639
    %808 = vrot.lane.b32.xlu0 %v805, 64
    %v809 = vpop.permute.xlu0 %808
    %v811 = vmul.f32 %v804, %v809
    %813 = vrot.lane.b32.xlu0 %v811, 32
    %v814 = vpop.permute.xlu0 %813
    %v816 = vadd.f32 %v806, %v814
    %v817 = vtanh.pop %v816
    %819 = vrot.lane.b32.xlu0 %v817, 64
    %v820 = vpop.permute.xlu0 %819
    %v822 = vmul.f32 %v804, %v820
    %824 = vrot.lane.b32.xlu0 %v822, 32
    %v825 = vpop.permute.xlu0 %824
    %827 = vst.msk [vmem:[#allocation2 + $0xc] sm:$0xf] %vm295, %v825
    %s828 = scalar_lea.vmem [#allocation3], 16
    %v829 = vld [vmem:[%s828] sm:$0xf]
    %v830 = vsel %vm104, %v825, 0
    %832 = vmatprep.subr.mxu0 0.0
    %833 = vmatpush1.msra.mxu0 %v96
    %834 = vmatprep.subr.mxu0 0.0
    %835 = vmatpush1.msra.mxu0 %v97
    %836 = vmatprep.subr.mxu0 0.0
    %837 = vmatpush1.msra.mxu0 %v98
    %838 = vmatprep.subr.mxu0 0.0
    %839 = vmatpush1.msra.mxu0 %v99
    %840 = vmatprep.subr.mxu0 0.0
    %841 = vmatpush1.msra.mxu0 0.0
    %842 = vmatprep.subr.mxu0 0.0
    %843 = vmatpush1.msra.mxu0 0.0
    %844 = vmatprep.subr.mxu0 0.0
    %845 = vmatpush1.msra.mxu0 0.0
    %846 = vmatprep.subr.mxu0 0.0
    %847 = vmatpush1.msra.mxu0 0.0
    %848 = vmatprep.subr.mxu0 0.0
    %849 = vmatpush1.msra.mxu0 0.0
    %850 = vmatprep.subr.mxu0 0.0
    %851 = vmatpush1.msra.mxu0 0.0
    %852 = vmatprep.subr.mxu0 0.0
    %853 = vmatpush1.msra.mxu0 0.0
    %854 = vmatprep.subr.mxu0 0.0
    %855 = vmatpush1.msra.mxu0 0.0
    %856 = vmatprep.subr.mxu0 0.0
    %857 = vmatpush1.msra.mxu0 0.0
    %858 = vmatprep.subr.mxu0 0.0
    %859 = vmatpush1.msra.mxu0 0.0
    %860 = vmatprep.subr.mxu0 0.0
    %861 = vmatpush1.msra.mxu0 0.0
    %862 = vmatprep.subr.mxu0 0.0
    %863 = vmatpush1.msra.mxu0 0.0
    %864 = vmatprep.subr.mxu0 0.0
    %865 = vmatpush1.msra.mxu0 0.0
    %866 = vmatprep.subr.mxu0 0.0
    %867 = vmatpush1.msra.mxu0 0.0
    %868 = vmatprep.subr.mxu0 0.0
    %869 = vmatpush1.msra.mxu0 0.0
    %870 = vmatprep.subr.mxu0 0.0
    %871 = vmatpush1.msra.mxu0 0.0
    %872 = vmatprep.subr.mxu0 0.0
    %873 = vmatpush1.msra.mxu0 0.0
    %874 = vmatprep.subr.mxu0 0.0
    %875 = vmatpush1.msra.mxu0 0.0
    %876 = vmatprep.subr.mxu0 0.0
    %877 = vmatpush1.msra.mxu0 0.0
    %878 = vmatprep.subr.mxu0 0.0
    %879 = vmatpush1.msra.mxu0 0.0
    %880 = vmatprep.subr.mxu0 0.0
    %881 = vmatpush1.msra.mxu0 0.0
    %882 = vmatprep.subr.mxu0 0.0
    %883 = vmatpush1.msra.mxu0 0.0
    %884 = vmatprep.subr.mxu0 0.0
    %885 = vmatpush1.msra.mxu0 0.0
    %886 = vmatprep.subr.mxu0 0.0
    %887 = vmatpush1.msra.mxu0 0.0
    %888 = vmatprep.subr.mxu0 0.0
    %889 = vmatpush1.msra.mxu0 0.0
    %890 = vmatprep.subr.mxu0 0.0
    %891 = vmatpush1.msra.mxu0 0.0
    %892 = vmatprep.subr.mxu0 0.0
    %893 = vmatpush1.msra.mxu0 0.0
    %894 = vmatprep.subr.mxu0 0.0
    %895 = vmatpush1.msra.mxu0 0.0
    %896 = vmatprep.mubr.f32.mxu0 0.0
    %897 = vmatmul.mubr.f32.gmra.mrb[0].mxu0 %v830
    %v898 = vpop.f32.mrb[0].mxu0
    %v899 = vadd.f32 0.0, %v898
    %v900 = vpop.f32.mrb[0].mxu0
    %901 = vdwg.mxu0
    %v903 = vsel %vm178, %v829, 0
    %905 = vmatprep.subr.mxu0 0.0
    %906 = vmatpush1.msra.mxu0 %v89
    %907 = vmatprep.subr.mxu0 0.0
    %908 = vmatpush1.msra.mxu0 %v90
    %909 = vmatprep.subr.mxu0 0.0
    %910 = vmatpush1.msra.mxu0 %v91
    %911 = vmatprep.subr.mxu0 0.0
    %912 = vmatpush1.msra.mxu0 %v92
    %913 = vmatprep.subr.mxu0 0.0
    %914 = vmatpush1.msra.mxu0 %v93
    %915 = vmatprep.subr.mxu0 0.0
    %916 = vmatpush1.msra.mxu0 %v94
    %917 = vmatprep.subr.mxu0 0.0
    %918 = vmatpush1.msra.mxu0 %v184
    %919 = vmatprep.subr.mxu0 0.0
    %920 = vmatpush1.msra.mxu0 0.0
    %921 = vmatprep.subr.mxu0 0.0
    %922 = vmatpush1.msra.mxu0 0.0
    %923 = vmatprep.subr.mxu0 0.0
    %924 = vmatpush1.msra.mxu0 0.0
    %925 = vmatprep.subr.mxu0 0.0
    %926 = vmatpush1.msra.mxu0 0.0
    %927 = vmatprep.subr.mxu0 0.0
    %928 = vmatpush1.msra.mxu0 0.0
    %929 = vmatprep.subr.mxu0 0.0
    %930 = vmatpush1.msra.mxu0 0.0
    %931 = vmatprep.subr.mxu0 0.0
    %932 = vmatpush1.msra.mxu0 0.0
    %933 = vmatprep.subr.mxu0 0.0
    %934 = vmatpush1.msra.mxu0 0.0
    %935 = vmatprep.subr.mxu0 0.0
    %936 = vmatpush1.msra.mxu0 0.0
    %937 = vmatprep.subr.mxu0 0.0
    %938 = vmatpush1.msra.mxu0 0.0
    %939 = vmatprep.subr.mxu0 0.0
    %940 = vmatpush1.msra.mxu0 0.0
    %941 = vmatprep.subr.mxu0 0.0
    %942 = vmatpush1.msra.mxu0 0.0
    %943 = vmatprep.subr.mxu0 0.0
    %944 = vmatpush1.msra.mxu0 0.0
    %945 = vmatprep.subr.mxu0 0.0
    %946 = vmatpush1.msra.mxu0 0.0
    %947 = vmatprep.subr.mxu0 0.0
    %948 = vmatpush1.msra.mxu0 0.0
    %949 = vmatprep.subr.mxu0 0.0
    %950 = vmatpush1.msra.mxu0 0.0
    %951 = vmatprep.subr.mxu0 0.0
    %952 = vmatpush1.msra.mxu0 0.0
    %953 = vmatprep.subr.mxu0 0.0
    %954 = vmatpush1.msra.mxu0 0.0
    %955 = vmatprep.subr.mxu0 0.0
    %956 = vmatpush1.msra.mxu0 0.0
    %957 = vmatprep.subr.mxu0 0.0
    %958 = vmatpush1.msra.mxu0 0.0
    %959 = vmatprep.subr.mxu0 0.0
    %960 = vmatpush1.msra.mxu0 0.0
    %961 = vmatprep.subr.mxu0 0.0
    %962 = vmatpush1.msra.mxu0 0.0
    %963 = vmatprep.subr.mxu0 0.0
    %964 = vmatpush1.msra.mxu0 0.0
    %965 = vmatprep.subr.mxu0 0.0
    %966 = vmatpush1.msra.mxu0 0.0
    %967 = vmatprep.subr.mxu0 0.0
    %968 = vmatpush1.msra.mxu0 0.0
    %969 = vmatprep.mubr.f32.mxu0 0.0
    %970 = vmatmul.mubr.f32.gmra.mrb[0].mxu0 %v903
    %v971 = vpop.f32.mrb[0].mxu0
    %v972 = vadd.f32 %v899, %v971
    %v973 = vpop.f32.mrb[0].mxu0
    %974 = vdwg.mxu0
    %v975 = vadd.f32 %v972, %v260
    %v976 = vxor.u32 %v975, 2147483648
    %v977 = vmul.f32 %v976, 1.442695
    %v978 = vpow.pop %v977
    %v979 = vadd.f32 %v978, 1.0
    %v980 = vrcp.pop %v979
    %v981 = vmul.f32 1.0, %v980
    %v982 = vtanh.pop %v975
    %v983 = vmul.f32 %v981, %v816
    %985 = vrot.lane.b32.xlu0 %v982, 64
    %v986 = vpop.permute.xlu0 %985
    %v988 = vmul.f32 %v981, %v986
    %990 = vrot.lane.b32.xlu0 %v988, 32
    %v991 = vpop.permute.xlu0 %990
    %v993 = vadd.f32 %v983, %v991
    %v994 = vtanh.pop %v993
    %996 = vrot.lane.b32.xlu0 %v994, 64
    %v997 = vpop.permute.xlu0 %996
    %v999 = vmul.f32 %v981, %v997
    %1001 = vrot.lane.b32.xlu0 %v999, 32
    %v1002 = vpop.permute.xlu0 %1001
    %1004 = vst.msk [vmem:[#allocation2 + $0x10] sm:$0xf] %vm295, %v1002
    %s1005 = scalar_lea.vmem [#allocation3], 20
    %v1006 = vld [vmem:[%s1005] sm:$0xf]
    %v1007 = vsel %vm104, %v1002, 0
    %1009 = vmatprep.subr.mxu0 0.0
    %1010 = vmatpush1.msra.mxu0 %v96
    %1011 = vmatprep.subr.mxu0 0.0
    %1012 = vmatpush1.msra.mxu0 %v97
    %1013 = vmatprep.subr.mxu0 0.0
    %1014 = vmatpush1.msra.mxu0 %v98
    %1015 = vmatprep.subr.mxu0 0.0
    %1016 = vmatpush1.msra.mxu0 %v99
    %1017 = vmatprep.subr.mxu0 0.0
    %1018 = vmatpush1.msra.mxu0 0.0
    %1019 = vmatprep.subr.mxu0 0.0
    %1020 = vmatpush1.msra.mxu0 0.0
    %1021 = vmatprep.subr.mxu0 0.0
    %1022 = vmatpush1.msra.mxu0 0.0
    %1023 = vmatprep.subr.mxu0 0.0
    %1024 = vmatpush1.msra.mxu0 0.0
    %1025 = vmatprep.subr.mxu0 0.0
    %1026 = vmatpush1.msra.mxu0 0.0
    %1027 = vmatprep.subr.mxu0 0.0
    %1028 = vmatpush1.msra.mxu0 0.0
    %1029 = vmatprep.subr.mxu0 0.0
    %1030 = vmatpush1.msra.mxu0 0.0
    %1031 = vmatprep.subr.mxu0 0.0
    %1032 = vmatpush1.msra.mxu0 0.0
    %1033 = vmatprep.subr.mxu0 0.0
    %1034 = vmatpush1.msra.mxu0 0.0
    %1035 = vmatprep.subr.mxu0 0.0
    %1036 = vmatpush1.msra.mxu0 0.0
    %1037 = vmatprep.subr.mxu0 0.0
    %1038 = vmatpush1.msra.mxu0 0.0
    %1039 = vmatprep.subr.mxu0 0.0
    %1040 = vmatpush1.msra.mxu0 0.0
    %1041 = vmatprep.subr.mxu0 0.0
    %1042 = vmatpush1.msra.mxu0 0.0
    %1043 = vmatprep.subr.mxu0 0.0
    %1044 = vmatpush1.msra.mxu0 0.0
    %1045 = vmatprep.subr.mxu0 0.0
    %1046 = vmatpush1.msra.mxu0 0.0
    %1047 = vmatprep.subr.mxu0 0.0
    %1048 = vmatpush1.msra.mxu0 0.0
    %1049 = vmatprep.subr.mxu0 0.0
    %1050 = vmatpush1.msra.mxu0 0.0
    %1051 = vmatprep.subr.mxu0 0.0
    %1052 = vmatpush1.msra.mxu0 0.0
    %1053 = vmatprep.subr.mxu0 0.0
    %1054 = vmatpush1.msra.mxu0 0.0
    %1055 = vmatprep.subr.mxu0 0.0
    %1056 = vmatpush1.msra.mxu0 0.0
    %1057 = vmatprep.subr.mxu0 0.0
    %1058 = vmatpush1.msra.mxu0 0.0
    %1059 = vmatprep.subr.mxu0 0.0
    %1060 = vmatpush1.msra.mxu0 0.0
    %1061 = vmatprep.subr.mxu0 0.0
    %1062 = vmatpush1.msra.mxu0 0.0
    %1063 = vmatprep.subr.mxu0 0.0
    %1064 = vmatpush1.msra.mxu0 0.0
    %1065 = vmatprep.subr.mxu0 0.0
    %1066 = vmatpush1.msra.mxu0 0.0
    %1067 = vmatprep.subr.mxu0 0.0
    %1068 = vmatpush1.msra.mxu0 0.0
    %1069 = vmatprep.subr.mxu0 0.0
    %1070 = vmatpush1.msra.mxu0 0.0
    %1071 = vmatprep.subr.mxu0 0.0
    %1072 = vmatpush1.msra.mxu0 0.0
    %1073 = vmatprep.mubr.f32.mxu0 0.0
    %1074 = vmatmul.mubr.f32.gmra.mrb[0].mxu0 %v1007
    %v1075 = vpop.f32.mrb[0].mxu0
    %v1076 = vadd.f32 0.0, %v1075
    %v1077 = vpop.f32.mrb[0].mxu0
    %1078 = vdwg.mxu0
    %v1080 = vsel %vm178, %v1006, 0
    %1082 = vmatprep.subr.mxu0 0.0
    %1083 = vmatpush1.msra.mxu0 %v89
    %1084 = vmatprep.subr.mxu0 0.0
    %1085 = vmatpush1.msra.mxu0 %v90
    %1086 = vmatprep.subr.mxu0 0.0
    %1087 = vmatpush1.msra.mxu0 %v91
    %1088 = vmatprep.subr.mxu0 0.0
    %1089 = vmatpush1.msra.mxu0 %v92
    %1090 = vmatprep.subr.mxu0 0.0
    %1091 = vmatpush1.msra.mxu0 %v93
    %1092 = vmatprep.subr.mxu0 0.0
    %1093 = vmatpush1.msra.mxu0 %v94
    %1094 = vmatprep.subr.mxu0 0.0
    %1095 = vmatpush1.msra.mxu0 %v184
    %1096 = vmatprep.subr.mxu0 0.0
    %1097 = vmatpush1.msra.mxu0 0.0
    %1098 = vmatprep.subr.mxu0 0.0
    %1099 = vmatpush1.msra.mxu0 0.0
    %1100 = vmatprep.subr.mxu0 0.0
    %1101 = vmatpush1.msra.mxu0 0.0
    %1102 = vmatprep.subr.mxu0 0.0
    %1103 = vmatpush1.msra.mxu0 0.0
    %1104 = vmatprep.subr.mxu0 0.0
    %1105 = vmatpush1.msra.mxu0 0.0
    %1106 = vmatprep.subr.mxu0 0.0
    %1107 = vmatpush1.msra.mxu0 0.0
    %1108 = vmatprep.subr.mxu0 0.0
    %1109 = vmatpush1.msra.mxu0 0.0
    %1110 = vmatprep.subr.mxu0 0.0
    %1111 = vmatpush1.msra.mxu0 0.0
    %1112 = vmatprep.subr.mxu0 0.0
    %1113 = vmatpush1.msra.mxu0 0.0
    %1114 = vmatprep.subr.mxu0 0.0
    %1115 = vmatpush1.msra.mxu0 0.0
    %1116 = vmatprep.subr.mxu0 0.0
    %1117 = vmatpush1.msra.mxu0 0.0
    %1118 = vmatprep.subr.mxu0 0.0
    %1119 = vmatpush1.msra.mxu0 0.0
    %1120 = vmatprep.subr.mxu0 0.0
    %1121 = vmatpush1.msra.mxu0 0.0
    %1122 = vmatprep.subr.mxu0 0.0
    %1123 = vmatpush1.msra.mxu0 0.0
    %1124 = vmatprep.subr.mxu0 0.0
    %1125 = vmatpush1.msra.mxu0 0.0
    %1126 = vmatprep.subr.mxu0 0.0
    %1127 = vmatpush1.msra.mxu0 0.0
    %1128 = vmatprep.subr.mxu0 0.0
    %1129 = vmatpush1.msra.mxu0 0.0
    %1130 = vmatprep.subr.mxu0 0.0
    %1131 = vmatpush1.msra.mxu0 0.0
    %1132 = vmatprep.subr.mxu0 0.0
    %1133 = vmatpush1.msra.mxu0 0.0
    %1134 = vmatprep.subr.mxu0 0.0
    %1135 = vmatpush1.msra.mxu0 0.0
    %1136 = vmatprep.subr.mxu0 0.0
    %1137 = vmatpush1.msra.mxu0 0.0
    %1138 = vmatprep.subr.mxu0 0.0
    %1139 = vmatpush1.msra.mxu0 0.0
    %1140 = vmatprep.subr.mxu0 0.0
    %1141 = vmatpush1.msra.mxu0 0.0
    %1142 = vmatprep.subr.mxu0 0.0
    %1143 = vmatpush1.msra.mxu0 0.0
    %1144 = vmatprep.subr.mxu0 0.0
    %1145 = vmatpush1.msra.mxu0 0.0
    %1146 = vmatprep.mubr.f32.mxu0 0.0
    %1147 = vmatmul.mubr.f32.gmra.mrb[0].mxu0 %v1080
    %v1148 = vpop.f32.mrb[0].mxu0
    %v1149 = vadd.f32 %v1076, %v1148
    %v1150 = vpop.f32.mrb[0].mxu0
    %1151 = vdwg.mxu0
    %v1152 = vadd.f32 %v1149, %v260
    %v1153 = vxor.u32 %v1152, 2147483648
    %v1154 = vmul.f32 %v1153, 1.442695
    %v1155 = vpow.pop %v1154
    %v1156 = vadd.f32 %v1155, 1.0
    %v1157 = vrcp.pop %v1156
    %v1158 = vmul.f32 1.0, %v1157
    %v1159 = vtanh.pop %v1152
    %v1160 = vmul.f32 %v1158, %v993
    %1162 = vrot.lane.b32.xlu0 %v1159, 64
    %v1163 = vpop.permute.xlu0 %1162
    %v1165 = vmul.f32 %v1158, %v1163
    %1167 = vrot.lane.b32.xlu0 %v1165, 32
    %v1168 = vpop.permute.xlu0 %1167
    %v1170 = vadd.f32 %v1160, %v1168
    %v1171 = vtanh.pop %v1170
    %1173 = vrot.lane.b32.xlu0 %v1171, 64
    %v1174 = vpop.permute.xlu0 %1173
    %v1176 = vmul.f32 %v1158, %v1174
    %1178 = vrot.lane.b32.xlu0 %v1176, 32
    %v1179 = vpop.permute.xlu0 %1178
    %1181 = vst.msk [vmem:[#allocation2 + $0x14] sm:$0xf] %vm295, %v1179
    %s1182 = scalar_lea.vmem [#allocation3], 24
    %v1183 = vld [vmem:[%s1182] sm:$0xf]
    %v1184 = vsel %vm104, %v1179, 0
    %1186 = vmatprep.subr.mxu0 0.0
    %1187 = vmatpush1.msra.mxu0 %v96
    %1188 = vmatprep.subr.mxu0 0.0
    %1189 = vmatpush1.msra.mxu0 %v97
    %1190 = vmatprep.subr.mxu0 0.0
    %1191 = vmatpush1.msra.mxu0 %v98
    %1192 = vmatprep.subr.mxu0 0.0
    %1193 = vmatpush1.msra.mxu0 %v99
    %1194 = vmatprep.subr.mxu0 0.0
    %1195 = vmatpush1.msra.mxu0 0.0
    %1196 = vmatprep.subr.mxu0 0.0
    %1197 = vmatpush1.msra.mxu0 0.0
    %1198 = vmatprep.subr.mxu0 0.0
    %1199 = vmatpush1.msra.mxu0 0.0
    %1200 = vmatprep.subr.mxu0 0.0
    %1201 = vmatpush1.msra.mxu0 0.0
    %1202 = vmatprep.subr.mxu0 0.0
    %1203 = vmatpush1.msra.mxu0 0.0
    %1204 = vmatprep.subr.mxu0 0.0
    %1205 = vmatpush1.msra.mxu0 0.0
    %1206 = vmatprep.subr.mxu0 0.0
    %1207 = vmatpush1.msra.mxu0 0.0
    %1208 = vmatprep.subr.mxu0 0.0
    %1209 = vmatpush1.msra.mxu0 0.0
    %1210 = vmatprep.subr.mxu0 0.0
    %1211 = vmatpush1.msra.mxu0 0.0
    %1212 = vmatprep.subr.mxu0 0.0
    %1213 = vmatpush1.msra.mxu0 0.0
    %1214 = vmatprep.subr.mxu0 0.0
    %1215 = vmatpush1.msra.mxu0 0.0
    %1216 = vmatprep.subr.mxu0 0.0
    %1217 = vmatpush1.msra.mxu0 0.0
    %1218 = vmatprep.subr.mxu0 0.0
    %1219 = vmatpush1.msra.mxu0 0.0
    %1220 = vmatprep.subr.mxu0 0.0
    %1221 = vmatpush1.msra.mxu0 0.0
    %1222 = vmatprep.subr.mxu0 0.0
    %1223 = vmatpush1.msra.mxu0 0.0
    %1224 = vmatprep.subr.mxu0 0.0
    %1225 = vmatpush1.msra.mxu0 0.0
    %1226 = vmatprep.subr.mxu0 0.0
    %1227 = vmatpush1.msra.mxu0 0.0
    %1228 = vmatprep.subr.mxu0 0.0
    %1229 = vmatpush1.msra.mxu0 0.0
    %1230 = vmatprep.subr.mxu0 0.0
    %1231 = vmatpush1.msra.mxu0 0.0
    %1232 = vmatprep.subr.mxu0 0.0
    %1233 = vmatpush1.msra.mxu0 0.0
    %1234 = vmatprep.subr.mxu0 0.0
    %1235 = vmatpush1.msra.mxu0 0.0
    %1236 = vmatprep.subr.mxu0 0.0
    %1237 = vmatpush1.msra.mxu0 0.0
    %1238 = vmatprep.subr.mxu0 0.0
    %1239 = vmatpush1.msra.mxu0 0.0
    %1240 = vmatprep.subr.mxu0 0.0
    %1241 = vmatpush1.msra.mxu0 0.0
    %1242 = vmatprep.subr.mxu0 0.0
    %1243 = vmatpush1.msra.mxu0 0.0
    %1244 = vmatprep.subr.mxu0 0.0
    %1245 = vmatpush1.msra.mxu0 0.0
    %1246 = vmatprep.subr.mxu0 0.0
    %1247 = vmatpush1.msra.mxu0 0.0
    %1248 = vmatprep.subr.mxu0 0.0
    %1249 = vmatpush1.msra.mxu0 0.0
    %1250 = vmatprep.mubr.f32.mxu0 0.0
    %1251 = vmatmul.mubr.f32.gmra.mrb[0].mxu0 %v1184
    %v1252 = vpop.f32.mrb[0].mxu0
    %v1253 = vadd.f32 0.0, %v1252
    %v1254 = vpop.f32.mrb[0].mxu0
    %1255 = vdwg.mxu0
    %v1257 = vsel %vm178, %v1183, 0
    %1259 = vmatprep.subr.mxu0 0.0
    %1260 = vmatpush1.msra.mxu0 %v89
    %1261 = vmatprep.subr.mxu0 0.0
    %1262 = vmatpush1.msra.mxu0 %v90
    %1263 = vmatprep.subr.mxu0 0.0
    %1264 = vmatpush1.msra.mxu0 %v91
    %1265 = vmatprep.subr.mxu0 0.0
    %1266 = vmatpush1.msra.mxu0 %v92
    %1267 = vmatprep.subr.mxu0 0.0
    %1268 = vmatpush1.msra.mxu0 %v93
    %1269 = vmatprep.subr.mxu0 0.0
    %1270 = vmatpush1.msra.mxu0 %v94
    %1271 = vmatprep.subr.mxu0 0.0
    %1272 = vmatpush1.msra.mxu0 %v184
    %1273 = vmatprep.subr.mxu0 0.0
    %1274 = vmatpush1.msra.mxu0 0.0
    %1275 = vmatprep.subr.mxu0 0.0
    %1276 = vmatpush1.msra.mxu0 0.0
    %1277 = vmatprep.subr.mxu0 0.0
    %1278 = vmatpush1.msra.mxu0 0.0
    %1279 = vmatprep.subr.mxu0 0.0
    %1280 = vmatpush1.msra.mxu0 0.0
    %1281 = vmatprep.subr.mxu0 0.0
    %1282 = vmatpush1.msra.mxu0 0.0
    %1283 = vmatprep.subr.mxu0 0.0
    %1284 = vmatpush1.msra.mxu0 0.0
    %1285 = vmatprep.subr.mxu0 0.0
    %1286 = vmatpush1.msra.mxu0 0.0
    %1287 = vmatprep.subr.mxu0 0.0
    %1288 = vmatpush1.msra.mxu0 0.0
    %1289 = vmatprep.subr.mxu0 0.0
    %1290 = vmatpush1.msra.mxu0 0.0
    %1291 = vmatprep.subr.mxu0 0.0
    %1292 = vmatpush1.msra.mxu0 0.0
    %1293 = vmatprep.subr.mxu0 0.0
    %1294 = vmatpush1.msra.mxu0 0.0
    %1295 = vmatprep.subr.mxu0 0.0
    %1296 = vmatpush1.msra.mxu0 0.0
    %1297 = vmatprep.subr.mxu0 0.0
    %1298 = vmatpush1.msra.mxu0 0.0
    %1299 = vmatprep.subr.mxu0 0.0
    %1300 = vmatpush1.msra.mxu0 0.0
    %1301 = vmatprep.subr.mxu0 0.0
    %1302 = vmatpush1.msra.mxu0 0.0
    %1303 = vmatprep.subr.mxu0 0.0
    %1304 = vmatpush1.msra.mxu0 0.0
    %1305 = vmatprep.subr.mxu0 0.0
    %1306 = vmatpush1.msra.mxu0 0.0
    %1307 = vmatprep.subr.mxu0 0.0
    %1308 = vmatpush1.msra.mxu0 0.0
    %1309 = vmatprep.subr.mxu0 0.0
    %1310 = vmatpush1.msra.mxu0 0.0
    %1311 = vmatprep.subr.mxu0 0.0
    %1312 = vmatpush1.msra.mxu0 0.0
    %1313 = vmatprep.subr.mxu0 0.0
    %1314 = vmatpush1.msra.mxu0 0.0
    %1315 = vmatprep.subr.mxu0 0.0
    %1316 = vmatpush1.msra.mxu0 0.0
    %1317 = vmatprep.subr.mxu0 0.0
    %1318 = vmatpush1.msra.mxu0 0.0
    %1319 = vmatprep.subr.mxu0 0.0
    %1320 = vmatpush1.msra.mxu0 0.0
    %1321 = vmatprep.subr.mxu0 0.0
    %1322 = vmatpush1.msra.mxu0 0.0
    %1323 = vmatprep.mubr.f32.mxu0 0.0
    %1324 = vmatmul.mubr.f32.gmra.mrb[0].mxu0 %v1257
    %v1325 = vpop.f32.mrb[0].mxu0
    %v1326 = vadd.f32 %v1253, %v1325
    %v1327 = vpop.f32.mrb[0].mxu0
    %1328 = vdwg.mxu0
    %v1329 = vadd.f32 %v1326, %v260
    %v1330 = vxor.u32 %v1329, 2147483648
    %v1331 = vmul.f32 %v1330, 1.442695
    %v1332 = vpow.pop %v1331
    %v1333 = vadd.f32 %v1332, 1.0
    %v1334 = vrcp.pop %v1333
    %v1335 = vmul.f32 1.0, %v1334
    %v1336 = vtanh.pop %v1329
    %v1337 = vmul.f32 %v1335, %v1170
    %1339 = vrot.lane.b32.xlu0 %v1336, 64
    %v1340 = vpop.permute.xlu0 %1339
    %v1342 = vmul.f32 %v1335, %v1340
    %1344 = vrot.lane.b32.xlu0 %v1342, 32
    %v1345 = vpop.permute.xlu0 %1344
    %v1347 = vadd.f32 %v1337, %v1345
    %v1348 = vtanh.pop %v1347
    %1350 = vrot.lane.b32.xlu0 %v1348, 64
    %v1351 = vpop.permute.xlu0 %1350
    %v1353 = vmul.f32 %v1335, %v1351
    %1355 = vrot.lane.b32.xlu0 %v1353, 32
    %v1356 = vpop.permute.xlu0 %1355
    %1358 = vst.msk [vmem:[#allocation2 + $0x18] sm:$0xf] %vm295, %v1356
    %s1359 = scalar_lea.vmem [#allocation3], 28
    %v1360 = vld [vmem:[%s1359] sm:$0xf]
    %v1361 = vsel %vm104, %v1356, 0
    %1363 = vmatprep.subr.mxu0 0.0
    %1364 = vmatpush1.msra.mxu0 %v96
    %1365 = vmatprep.subr.mxu0 0.0
    %1366 = vmatpush1.msra.mxu0 %v97
    %1367 = vmatprep.subr.mxu0 0.0
    %1368 = vmatpush1.msra.mxu0 %v98
    %1369 = vmatprep.subr.mxu0 0.0
    %1370 = vmatpush1.msra.mxu0 %v99
    %1371 = vmatprep.subr.mxu0 0.0
    %1372 = vmatpush1.msra.mxu0 0.0
    %1373 = vmatprep.subr.mxu0 0.0
    %1374 = vmatpush1.msra.mxu0 0.0
    %1375 = vmatprep.subr.mxu0 0.0
    %1376 = vmatpush1.msra.mxu0 0.0
    %1377 = vmatprep.subr.mxu0 0.0
    %1378 = vmatpush1.msra.mxu0 0.0
    %1379 = vmatprep.subr.mxu0 0.0
    %1380 = vmatpush1.msra.mxu0 0.0
    %1381 = vmatprep.subr.mxu0 0.0
    %1382 = vmatpush1.msra.mxu0 0.0
    %1383 = vmatprep.subr.mxu0 0.0
    %1384 = vmatpush1.msra.mxu0 0.0
    %1385 = vmatprep.subr.mxu0 0.0
    %1386 = vmatpush1.msra.mxu0 0.0
    %1387 = vmatprep.subr.mxu0 0.0
    %1388 = vmatpush1.msra.mxu0 0.0
    %1389 = vmatprep.subr.mxu0 0.0
    %1390 = vmatpush1.msra.mxu0 0.0
    %1391 = vmatprep.subr.mxu0 0.0
    %1392 = vmatpush1.msra.mxu0 0.0
    %1393 = vmatprep.subr.mxu0 0.0
    %1394 = vmatpush1.msra.mxu0 0.0
    %1395 = vmatprep.subr.mxu0 0.0
    %1396 = vmatpush1.msra.mxu0 0.0
    %1397 = vmatprep.subr.mxu0 0.0
    %1398 = vmatpush1.msra.mxu0 0.0
    %1399 = vmatprep.subr.mxu0 0.0
    %1400 = vmatpush1.msra.mxu0 0.0
    %1401 = vmatprep.subr.mxu0 0.0
    %1402 = vmatpush1.msra.mxu0 0.0
    %1403 = vmatprep.subr.mxu0 0.0
    %1404 = vmatpush1.msra.mxu0 0.0
    %1405 = vmatprep.subr.mxu0 0.0
    %1406 = vmatpush1.msra.mxu0 0.0
    %1407 = vmatprep.subr.mxu0 0.0
    %1408 = vmatpush1.msra.mxu0 0.0
    %1409 = vmatprep.subr.mxu0 0.0
    %1410 = vmatpush1.msra.mxu0 0.0
    %1411 = vmatprep.subr.mxu0 0.0
    %1412 = vmatpush1.msra.mxu0 0.0
    %1413 = vmatprep.subr.mxu0 0.0
    %1414 = vmatpush1.msra.mxu0 0.0
    %1415 = vmatprep.subr.mxu0 0.0
    %1416 = vmatpush1.msra.mxu0 0.0
    %1417 = vmatprep.subr.mxu0 0.0
    %1418 = vmatpush1.msra.mxu0 0.0
    %1419 = vmatprep.subr.mxu0 0.0
    %1420 = vmatpush1.msra.mxu0 0.0
    %1421 = vmatprep.subr.mxu0 0.0
    %1422 = vmatpush1.msra.mxu0 0.0
    %1423 = vmatprep.subr.mxu0 0.0
    %1424 = vmatpush1.msra.mxu0 0.0
    %1425 = vmatprep.subr.mxu0 0.0
    %1426 = vmatpush1.msra.mxu0 0.0
    %1427 = vmatprep.mubr.f32.mxu0 0.0
    %1428 = vmatmul.mubr.f32.gmra.mrb[0].mxu0 %v1361
    %v1429 = vpop.f32.mrb[0].mxu0
    %v1430 = vadd.f32 0.0, %v1429
    %v1431 = vpop.f32.mrb[0].mxu0
    %1432 = vdwg.mxu0
    %v1434 = vsel %vm178, %v1360, 0
    %1436 = vmatprep.subr.mxu0 0.0
    %1437 = vmatpush1.msra.mxu0 %v89
    %1438 = vmatprep.subr.mxu0 0.0
    %1439 = vmatpush1.msra.mxu0 %v90
    %1440 = vmatprep.subr.mxu0 0.0
    %1441 = vmatpush1.msra.mxu0 %v91
    %1442 = vmatprep.subr.mxu0 0.0
    %1443 = vmatpush1.msra.mxu0 %v92
    %1444 = vmatprep.subr.mxu0 0.0
    %1445 = vmatpush1.msra.mxu0 %v93
    %1446 = vmatprep.subr.mxu0 0.0
    %1447 = vmatpush1.msra.mxu0 %v94
    %1448 = vmatprep.subr.mxu0 0.0
    %1449 = vmatpush1.msra.mxu0 %v184
    %1450 = vmatprep.subr.mxu0 0.0
    %1451 = vmatpush1.msra.mxu0 0.0
    %1452 = vmatprep.subr.mxu0 0.0
    %1453 = vmatpush1.msra.mxu0 0.0
    %1454 = vmatprep.subr.mxu0 0.0
    %1455 = vmatpush1.msra.mxu0 0.0
    %1456 = vmatprep.subr.mxu0 0.0
    %1457 = vmatpush1.msra.mxu0 0.0
    %1458 = vmatprep.subr.mxu0 0.0
    %1459 = vmatpush1.msra.mxu0 0.0
    %1460 = vmatprep.subr.mxu0 0.0
    %1461 = vmatpush1.msra.mxu0 0.0
    %1462 = vmatprep.subr.mxu0 0.0
    %1463 = vmatpush1.msra.mxu0 0.0
    %1464 = vmatprep.subr.mxu0 0.0
    %1465 = vmatpush1.msra.mxu0 0.0
    %1466 = vmatprep.subr.mxu0 0.0
    %1467 = vmatpush1.msra.mxu0 0.0
    %1468 = vmatprep.subr.mxu0 0.0
    %1469 = vmatpush1.msra.mxu0 0.0
    %1470 = vmatprep.subr.mxu0 0.0
    %1471 = vmatpush1.msra.mxu0 0.0
    %1472 = vmatprep.subr.mxu0 0.0
    %1473 = vmatpush1.msra.mxu0 0.0
    %1474 = vmatprep.subr.mxu0 0.0
    %1475 = vmatpush1.msra.mxu0 0.0
    %1476 = vmatprep.subr.mxu0 0.0
    %1477 = vmatpush1.msra.mxu0 0.0
    %1478 = vmatprep.subr.mxu0 0.0
    %1479 = vmatpush1.msra.mxu0 0.0
    %1480 = vmatprep.subr.mxu0 0.0
    %1481 = vmatpush1.msra.mxu0 0.0
    %1482 = vmatprep.subr.mxu0 0.0
    %1483 = vmatpush1.msra.mxu0 0.0
    %1484 = vmatprep.subr.mxu0 0.0
    %1485 = vmatpush1.msra.mxu0 0.0
    %1486 = vmatprep.subr.mxu0 0.0
    %1487 = vmatpush1.msra.mxu0 0.0
    %1488 = vmatprep.subr.mxu0 0.0
    %1489 = vmatpush1.msra.mxu0 0.0
    %1490 = vmatprep.subr.mxu0 0.0
    %1491 = vmatpush1.msra.mxu0 0.0
    %1492 = vmatprep.subr.mxu0 0.0
    %1493 = vmatpush1.msra.mxu0 0.0
    %1494 = vmatprep.subr.mxu0 0.0
    %1495 = vmatpush1.msra.mxu0 0.0
    %1496 = vmatprep.subr.mxu0 0.0
    %1497 = vmatpush1.msra.mxu0 0.0
    %1498 = vmatprep.subr.mxu0 0.0
    %1499 = vmatpush1.msra.mxu0 0.0
    %1500 = vmatprep.mubr.f32.mxu0 0.0
    %1501 = vmatmul.mubr.f32.gmra.mrb[0].mxu0 %v1434
    %v1502 = vpop.f32.mrb[0].mxu0
    %v1503 = vadd.f32 %v1430, %v1502
    %v1504 = vpop.f32.mrb[0].mxu0
    %1505 = vdwg.mxu0
    %v1506 = vadd.f32 %v1503, %v260
    %v1507 = vxor.u32 %v1506, 2147483648
    %v1508 = vmul.f32 %v1507, 1.442695
    %v1509 = vpow.pop %v1508
    %v1510 = vadd.f32 %v1509, 1.0
    %v1511 = vrcp.pop %v1510
    %v1512 = vmul.f32 1.0, %v1511
    %v1513 = vtanh.pop %v1506
    %v1514 = vmul.f32 %v1512, %v1347
    %1516 = vrot.lane.b32.xlu0 %v1513, 64
    %v1517 = vpop.permute.xlu0 %1516
    %v1519 = vmul.f32 %v1512, %v1517
    %1521 = vrot.lane.b32.xlu0 %v1519, 32
    %v1522 = vpop.permute.xlu0 %1521
    %v1524 = vadd.f32 %v1514, %v1522
    %v1525 = vtanh.pop %v1524
    %1527 = vrot.lane.b32.xlu0 %v1525, 64
    %v1528 = vpop.permute.xlu0 %1527
    %v1530 = vmul.f32 %v1512, %v1528
    %1532 = vrot.lane.b32.xlu0 %v1530, 32
    %v1533 = vpop.permute.xlu0 %1532
    %1535 = vst.msk [vmem:[#allocation2 + $0x1c] sm:$0xf] %vm295, %v1533
    %1536 = vst.msk [vmem:[#allocation12] sm:$0xf] %vm295, %v1533
    %1538 = vrot.lane.b32.xlu0 %v1524, 96
    %v1539 = vpop.permute.xlu0 %1538
    %1541 = vst.msk [vmem:[#allocation14] sm:$0xf] %vm295, %v1539
    %v1542 = vld [vmem:[#allocation2] sm:$0xff]
    %v1543 = vld [vmem:[#allocation2 + $0x8] sm:$0xff]
    %v1544 = vld [vmem:[#allocation2 + $0x10] sm:$0xff]
    %v1545 = vld [vmem:[#allocation2 + $0x18] sm:$0xff]
    %v1546 = vld [vmem:[#allocation9] sm:$0xff]
    %v1547 = vld [vmem:[#allocation9 + $0x8] sm:$0xff]
    %v1548 = vld [vmem:[#allocation9 + $0x10] sm:$0xff]
    %v1549 = vld [vmem:[#allocation9 + $0x18] sm:$0xff]
    %v1550 = vld [vmem:[%s5] sm:$0x1]
    %v1552 = vlaneseq
    %v1553 = vshrl.u32 %v1552, 7
    %v1554 = vsub.s32 0, %v1553
    %v1555 = vrot.slane %v1550, %v1554
    %v1558 = vsel %vm104, %v1542, 0
    %v1561 = vsel %vm104, %v1543, 0
    %v1564 = vsel %vm104, %v1544, 0
    %v1567 = vsel %vm104, %v1545, 0
    %1569 = vmatprep.subr.mxu0 0.0
    %1570 = vmatpush1.msra.mxu0 %v1546
    %1571 = vmatprep.subr.mxu0 0.0
    %1572 = vmatpush1.msra.mxu0 %v1547
    %1573 = vmatprep.subr.mxu0 0.0
    %1574 = vmatpush1.msra.mxu0 %v1548
    %1575 = vmatprep.subr.mxu0 0.0
    %1576 = vmatpush1.msra.mxu0 %v1549
    %1577 = vmatprep.subr.mxu0 0.0
    %1578 = vmatpush1.msra.mxu0 0.0
    %1579 = vmatprep.subr.mxu0 0.0
    %1580 = vmatpush1.msra.mxu0 0.0
    %1581 = vmatprep.subr.mxu0 0.0
    %1582 = vmatpush1.msra.mxu0 0.0
    %1583 = vmatprep.subr.mxu0 0.0
    %1584 = vmatpush1.msra.mxu0 0.0
    %1585 = vmatprep.subr.mxu0 0.0
    %1586 = vmatpush1.msra.mxu0 0.0
    %1587 = vmatprep.subr.mxu0 0.0
    %1588 = vmatpush1.msra.mxu0 0.0
    %1589 = vmatprep.subr.mxu0 0.0
    %1590 = vmatpush1.msra.mxu0 0.0
    %1591 = vmatprep.subr.mxu0 0.0
    %1592 = vmatpush1.msra.mxu0 0.0
    %1593 = vmatprep.subr.mxu0 0.0
    %1594 = vmatpush1.msra.mxu0 0.0
    %1595 = vmatprep.subr.mxu0 0.0
    %1596 = vmatpush1.msra.mxu0 0.0
    %1597 = vmatprep.subr.mxu0 0.0
    %1598 = vmatpush1.msra.mxu0 0.0
    %1599 = vmatprep.subr.mxu0 0.0
    %1600 = vmatpush1.msra.mxu0 0.0
    %1601 = vmatprep.subr.mxu0 0.0
    %1602 = vmatpush1.msra.mxu0 0.0
    %1603 = vmatprep.subr.mxu0 0.0
    %1604 = vmatpush1.msra.mxu0 0.0
    %1605 = vmatprep.subr.mxu0 0.0
    %1606 = vmatpush1.msra.mxu0 0.0
    %1607 = vmatprep.subr.mxu0 0.0
    %1608 = vmatpush1.msra.mxu0 0.0
    %1609 = vmatprep.subr.mxu0 0.0
    %1610 = vmatpush1.msra.mxu0 0.0
    %1611 = vmatprep.subr.mxu0 0.0
    %1612 = vmatpush1.msra.mxu0 0.0
    %1613 = vmatprep.subr.mxu0 0.0
    %1614 = vmatpush1.msra.mxu0 0.0
    %1615 = vmatprep.subr.mxu0 0.0
    %1616 = vmatpush1.msra.mxu0 0.0
    %1617 = vmatprep.subr.mxu0 0.0
    %1618 = vmatpush1.msra.mxu0 0.0
    %1619 = vmatprep.subr.mxu0 0.0
    %1620 = vmatpush1.msra.mxu0 0.0
    %1621 = vmatprep.subr.mxu0 0.0
    %1622 = vmatpush1.msra.mxu0 0.0
    %1623 = vmatprep.subr.mxu0 0.0
    %1624 = vmatpush1.msra.mxu0 0.0
    %1625 = vmatprep.subr.mxu0 0.0
    %1626 = vmatpush1.msra.mxu0 0.0
    %1627 = vmatprep.subr.mxu0 0.0
    %1628 = vmatpush1.msra.mxu0 0.0
    %1629 = vmatprep.subr.mxu0 0.0
    %1630 = vmatpush1.msra.mxu0 0.0
    %1631 = vmatprep.subr.mxu0 0.0
    %1632 = vmatpush1.msra.mxu0 0.0
    %1633 = vmatprep.mubr.f32.mxu0 0.0
    %1634 = vmatmul.mubr.f32.gmra.mrb[0].mxu0 %v1558
    %v1635 = vpop.f32.mrb[0].mxu0
    %v1636 = vadd.f32 %v1555, %v1635
    %v1637 = vpop.f32.mrb[0].mxu0
    %1638 = vmatprep.mubr.f32.mxu0 0.0
    %1639 = vmatmul.mubr.f32.gmra.mrb[0].mxu0 %v1561
    %v1640 = vpop.f32.mrb[0].mxu0
    %v1641 = vadd.f32 %v1555, %v1640
    %v1642 = vpop.f32.mrb[0].mxu0
    %1643 = vmatprep.mubr.f32.mxu0 0.0
    %1644 = vmatmul.mubr.f32.gmra.mrb[0].mxu0 %v1564
    %v1645 = vpop.f32.mrb[0].mxu0
    %v1646 = vadd.f32 %v1555, %v1645
    %v1647 = vpop.f32.mrb[0].mxu0
    %1648 = vmatprep.mubr.f32.mxu0 0.0
    %1649 = vmatmul.mubr.f32.gmra.mrb[0].mxu0 %v1567
    %v1650 = vpop.f32.mrb[0].mxu0
    %v1651 = vadd.f32 %v1555, %v1650
    %v1652 = vpop.f32.mrb[0].mxu0
    %1653 = vdwg.mxu0
    %1654 = vst [vmem:[#allocation11] sm:$0xff] %v1636
    %1655 = vst [vmem:[#allocation11 + $0x8] sm:$0xff] %v1641
    %1656 = vst [vmem:[#allocation11 + $0x10] sm:$0xff] %v1646
    %1657 = vst [vmem:[#allocation11 + $0x18] sm:$0xff] %v1651
    // Predicated region
    $region50: #{tpu_custom_call.1} parent=1 // pred_check
      _
    $region51: #{tpu_custom_call.1} parent=1 // pred_check_branch
      %1659 = sbr.rel (0) target = $region53
    $region52: #{tpu_custom_call.1} parent=1 // pred_region
      %s1661 = ssub.s32 512, 512
      %1662 = vsyncadd [#allocation5], %s1661
      %s1663 = sshll.u32 [#allocation11], 4
      %s1664 = int_to_ptr.vmem [resolvable:$true] %s1663
      %1669 = dma.vmem_to_hbm [thread:$0]  %s1664, 512, %s8, [#allocation5], 128, 128, 8
    $region53: #{tpu_custom_call.1} parent=1 // pred_fallthru
      _
    // Predicated region
    $region54: #{tpu_custom_call.1} parent=1 // pred_check
      _
    $region55: #{tpu_custom_call.1} parent=1 // pred_check_branch
      %1671 = sbr.rel (0) target = $region57
    $region56: #{tpu_custom_call.1} parent=1 // pred_region
      %s1673 = ssub.s32 64, 64
      %1674 = vsyncadd [#allocation13], %s1673
      %s1676 = sshll.u32 [#allocation12], 4
      %s1677 = int_to_ptr.vmem [resolvable:$true] %s1676
      %1679 = dma.vmem_to_hbm [thread:$0]  %s1677, 64, %s9, [#allocation13]
    $region57: #{tpu_custom_call.1} parent=1 // pred_fallthru
      _
    // Predicated region
    $region58: #{tpu_custom_call.1} parent=1 // pred_check
      _
    $region59: #{tpu_custom_call.1} parent=1 // pred_check_branch
      %1681 = sbr.rel (0) target = $region61
    $region60: #{tpu_custom_call.1} parent=1 // pred_region
      %s1683 = ssub.s32 64, 64
      %1684 = vsyncadd [#allocation13], %s1683
      %s1686 = sshll.u32 [#allocation14], 4
      %s1687 = int_to_ptr.vmem [resolvable:$true] %s1686
      %1689 = dma.vmem_to_hbm [thread:$0]  %s1687, 64, %s10, [#allocation13]
    $region61: #{tpu_custom_call.1} parent=1 // pred_fallthru
      _
    // Predicated region
    $region62: #{tpu_custom_call.1} parent=1 // pred_check
      _
    $region63: #{tpu_custom_call.1} parent=1 // pred_check_branch
      %1691 = sbr.rel (0) target = $region65
    $region64: #{tpu_custom_call.1} parent=1 // pred_region
      %1692 = dma.done [#allocation5], 512
    $region65: #{tpu_custom_call.1} parent=1 // pred_fallthru
      _
    // Predicated region
    $region66: #{tpu_custom_call.1} parent=1 // pred_check
      _
    $region67: #{tpu_custom_call.1} parent=1 // pred_check_branch
      %1694 = sbr.rel (0) target = $region69
    $region68: #{tpu_custom_call.1} parent=1 // pred_region
      %1695 = dma.done [#allocation13], 64
    $region69: #{tpu_custom_call.1} parent=1 // pred_fallthru
      _
    // Predicated region
    $region70: #{tpu_custom_call.1} parent=1 // pred_check
      _
    $region71: #{tpu_custom_call.1} parent=1 // pred_check_branch
      %1697 = sbr.rel (0) target = $region73
    $region72: #{tpu_custom_call.1} parent=1 // pred_region
      %1698 = dma.done [#allocation13], 64
    $region73: #{tpu_custom_call.1} parent=1 // pred_fallthru
      _
    %1699 = vsyncpa [#allocation4], 1
    %1700 = vsyncpa [#allocation7], 1
    %1701 = vsyncpa [#allocation10], 1
    %1702 = vsyncpa [#allocation5], 1
    %1703 = vsyncpa [#allocation13], 1

</llo_original>
